<compile_context>
chip_gen: v7x
topology: tpu7x:2x2x1
jax: 0.10.0
libtpu: 0.0.40
codegen_flags: <defaults>
</compile_context>

<pallas_src>
import functools

import jax
import jax.numpy as jnp
import numpy as np
from jax import lax
from jax.experimental import pallas as pl
from jax.experimental.pallas import tpu as pltpu

KH = KW = 7
PAD = (KH - 1) // 2
BN_EPS = 1e-5


def _spatial_gate_kernel(x_ref, w_ref, b_ref, o_ref, pad_ref, flat_ref, *, C, H, W):
    # x_ref   : (C, H*W)          VMEM, lane-dense channel planes for one batch
    # w_ref   : (49,)             SMEM, conv weight pre-scaled by gamma*rsqrt(var+eps)/C
    # b_ref   : (1,)              SMEM, folded BN bias  beta - mean*gamma*rsqrt(var+eps)
    # o_ref   : (C, H*W)          VMEM, output block
    # pad_ref : (H+6, W+6)        VMEM scratch, zero-padded channel-sum plane
    # flat_ref: (1, H*W)          VMEM scratch, flat <-> 2-D bridge plane
    HW = H * W

    # ---- ChannelPool: one vectorized sublane reduction over the resident block.
    # (1/C of the mean is folded into the conv weights.)
    flat_ref[...] = jnp.sum(x_ref[...].astype(jnp.float32), axis=0, keepdims=True)

    # ---- clear the padded plane (interior overwritten just below; rewritten
    # every grid step so megacore "parallel" over N stays correct).
    pad_ref[...] = jnp.zeros_like(pad_ref)

    # ---- flat (1,HW) -> 2-D (H,W) interior of the padded plane (tiny row copies) ----
    for h in range(H):
        pad_ref[PAD + h:PAD + h + 1, PAD:PAD + W] = flat_ref[0:1, h * W:(h + 1) * W]

    # ---- 7x7 cross-correlation (PyTorch Conv2d semantics), BN folded, no bias ----
    # 7 lane-offset loads (dw), reused across the 7 cheap sublane offsets (dh).
    acc = jnp.zeros((H, W), jnp.float32)
    for dw in range(KW):
        col = pad_ref[:, dw:dw + W]                       # (H+6, W)
        for dh in range(KH):
            acc = acc + w_ref[dh * KW + dw] * col[dh:dh + H, :]

    # ---- folded BatchNorm bias + sigmoid gate ----
    scale2d = jax.nn.sigmoid(acc + b_ref[0])              # (H, W)

    # ---- 2-D (H,W) -> flat (1,HW) bridge so the broadcast multiply is lane-dense ----
    for h in range(H):
        flat_ref[0:1, h * W:(h + 1) * W] = scale2d[h:h + 1, :]

    # ---- gated output: single broadcast multiply, lane-dense store ----
    o_ref[...] = (x_ref[...].astype(jnp.float32) * flat_ref[...]).astype(o_ref.dtype)


def spatial_gate(x, conv_w, bn_params):
    """x: (N, C, H, W); conv_w: (1, 1, 7, 7); bn_params: (1, 4) = [gamma, beta, mean, var]."""
    N, C, H, W = x.shape
    HW = H * W

    # Lane-dense view of the big arrays (no data movement for contiguous NCHW).
    x_flat = x.reshape(N, C, HW)

    bn = bn_params.reshape(-1).astype(jnp.float32)
    gamma, beta, r_mean, r_var = bn[0], bn[1], bn[2], bn[3]
    bn_scale = gamma * lax.rsqrt(r_var + BN_EPS)
    # Fold the channel-mean 1/C and the (linear, bias-free) BN scale into the
    # conv weights; fold the BN shift into a single scalar bias.
    w_flat = (conv_w.reshape(KH * KW).astype(jnp.float32) * (bn_scale / C))
    bias = jnp.reshape(beta - r_mean * bn_scale, (1,))

    kernel = functools.partial(_spatial_gate_kernel, C=C, H=H, W=W)

    out_flat = pl.pallas_call(
        kernel,
        out_shape=jax.ShapeDtypeStruct((N, C, HW), x.dtype),
        grid_spec=pltpu.PrefetchScalarGridSpec(
            num_scalar_prefetch=0,
            grid=(N,),
            in_specs=[
                pl.BlockSpec((None, C, HW), lambda n: (n, 0, 0)),
                pl.BlockSpec(memory_space=pltpu.MemorySpace.SMEM),
                pl.BlockSpec(memory_space=pltpu.MemorySpace.SMEM),
            ],
            out_specs=pl.BlockSpec((None, C, HW), lambda n: (n, 0, 0)),
            scratch_shapes=[
                pltpu.VMEM((H + 2 * PAD, W + 2 * PAD), jnp.float32),
                pltpu.VMEM((1, HW), jnp.float32),
            ],
        ),
        compiler_params=pltpu.CompilerParams(
            dimension_semantics=("parallel",),
            vmem_limit_bytes=64 * 1024 * 1024,
        ),
    )(x_flat, w_flat, bias)

    return out_flat.reshape(N, C, H, W)


def spatial_gate_reference(x, conv_w, bn_params):
    """Pure-JAX reference mirroring the PyTorch module (eval-mode BN)."""
    xf = x.astype(jnp.float32)
    m = jnp.mean(xf, axis=1, keepdims=True)                # (N,1,H,W)
    y = jax.lax.conv_general_dilated(
        m, conv_w.astype(jnp.float32),
        window_strides=(1, 1), padding=((PAD, PAD), (PAD, PAD)),
        dimension_numbers=("NCHW", "OIHW", "NCHW"))
    gamma, beta, r_mean, r_var = [bn_params[0, i] for i in range(4)]
    y = (y - r_mean) * jax.lax.rsqrt(r_var + BN_EPS) * gamma + beta
    return (xf * jax.nn.sigmoid(y)).astype(x.dtype)


if __name__ == "__main__":
    key = jax.random.PRNGKey(0)
    kx, kw = jax.random.split(key)

    N, C, H, W = 2, 4, 16, 16
    x = jax.random.normal(kx, (N, C, H, W), dtype=jnp.float32)

    # Deterministic synthetic parameters (shapes from the module's __init__).
    conv_w = 0.1 * jax.random.normal(kw, (1, 1, KH, KW), dtype=jnp.float32)
    # BatchNorm2d(1): [gamma, beta, running_mean, running_var]
    # TODO(synk): training-mode BN (batch statistics) has no per-batch-stat path
    # here; the kernel implements the standard eval-mode (running-stats) forward.
    bn_params = jnp.array([[1.2, 0.1, 0.05, 0.9]], dtype=jnp.float32)

    out = spatial_gate(x, conv_w, bn_params)
    out = jax.block_until_ready(out)

    ref = jax.block_until_ready(spatial_gate_reference(x, conv_w, bn_params))
    np.testing.assert_allclose(np.asarray(out), np.asarray(ref), rtol=1e-5, atol=1e-5)

    print("KERNEL_OK")
</pallas_src>

<mosaic_0001>
module attributes {stable_mosaic.version = 11 : i64} {
  func.func @_spatial_gate_kernel(%arg0: i32, %arg1: memref<1x4x256xf32, #tpu.memory_space<vmem>>, %arg2: memref<49xf32, #tpu.memory_space<smem>>, %arg3: memref<1xf32, #tpu.memory_space<smem>>, %arg4: memref<1x4x256xf32, #tpu.memory_space<vmem>>, %arg5: memref<22x22xf32, #tpu.memory_space<vmem>>, %arg6: memref<1x256xf32, #tpu.memory_space<vmem>>) attributes {dimension_semantics = [#tpu.dimension_semantics<parallel>], iteration_bounds = array<i64: 2>, scalar_prefetch = 0 : i64, scratch_operands = 2 : i64, tpu.core_type = #tpu.core_type<tc>, window_params = [{transform_indices = @transform_0, window_bounds = array<i64: 1, 4, 256>}, {transform_indices = @transform_1, window_bounds = array<i64: 49>}, {transform_indices = @transform_2, window_bounds = array<i64: 1>}, {transform_indices = @transform_3, window_bounds = array<i64: 1, 4, 256>}]} {
    %c0 = arith.constant 0 : index
    %c0_0 = arith.constant 0 : index
    %c0_1 = arith.constant 0 : index
    %0 = vector.load %arg1[%c0, %c0_0, %c0_1] : memref<1x4x256xf32, #tpu.memory_space<vmem>>, vector<1x4x256xf32>
    %1 = vector.shape_cast %0 : vector<1x4x256xf32> to vector<4x256xf32>
    %cst = arith.constant dense<0.000000e+00> : vector<256xf32>
    %2 = vector.multi_reduction <add>, %1, %cst [0] : vector<4x256xf32> to vector<256xf32>
    %3 = vector.shape_cast %2 : vector<256xf32> to vector<1x256xf32>
    %c0_2 = arith.constant 0 : index
    %c0_3 = arith.constant 0 : index
    %4 = vector.load %arg6[%c0_2, %c0_3] : memref<1x256xf32, #tpu.memory_space<vmem>>, vector<1x256xf32>
    tpu.vector_store %arg6[%c0_2, %c0_3], %3 {strides = array<i32>} : memref<1x256xf32, #tpu.memory_space<vmem>>, vector<1x256xf32>,
    %cst_4 = arith.constant 0.000000e+00 : f32
    %5 = vector.broadcast %cst_4 : f32 to vector<22x22xf32>
    %c0_5 = arith.constant 0 : index
    %c0_6 = arith.constant 0 : index
    %6 = vector.load %arg5[%c0_5, %c0_6] : memref<22x22xf32, #tpu.memory_space<vmem>>, vector<22x22xf32>
    tpu.vector_store %arg5[%c0_5, %c0_6], %5 {strides = array<i32>} : memref<22x22xf32, #tpu.memory_space<vmem>>, vector<22x22xf32>,
    %c0_7 = arith.constant 0 : index
    %c0_8 = arith.constant 0 : index
    %7 = vector.load %arg6[%c0_7, %c0_8] : memref<1x256xf32, #tpu.memory_space<vmem>>, vector<1x16xf32>
    %c3 = arith.constant 3 : index
    %c3_9 = arith.constant 3 : index
    %8 = vector.load %arg5[%c3, %c3_9] : memref<22x22xf32, #tpu.memory_space<vmem>>, vector<1x16xf32>
    tpu.vector_store %arg5[%c3, %c3_9], %7 {strides = array<i32>} : memref<22x22xf32, #tpu.memory_space<vmem>>, vector<1x16xf32>,
    %c0_10 = arith.constant 0 : index
    %c16 = arith.constant 16 : index
    %9 = vector.load %arg6[%c0_10, %c16] : memref<1x256xf32, #tpu.memory_space<vmem>>, vector<1x16xf32>
    %c4 = arith.constant 4 : index
    %c3_11 = arith.constant 3 : index
    %10 = vector.load %arg5[%c4, %c3_11] : memref<22x22xf32, #tpu.memory_space<vmem>>, vector<1x16xf32>
    tpu.vector_store %arg5[%c4, %c3_11], %9 {strides = array<i32>} : memref<22x22xf32, #tpu.memory_space<vmem>>, vector<1x16xf32>,
    %c0_12 = arith.constant 0 : index
    %c32 = arith.constant 32 : index
    %11 = vector.load %arg6[%c0_12, %c32] : memref<1x256xf32, #tpu.memory_space<vmem>>, vector<1x16xf32>
    %c5 = arith.constant 5 : index
    %c3_13 = arith.constant 3 : index
    %12 = vector.load %arg5[%c5, %c3_13] : memref<22x22xf32, #tpu.memory_space<vmem>>, vector<1x16xf32>
    tpu.vector_store %arg5[%c5, %c3_13], %11 {strides = array<i32>} : memref<22x22xf32, #tpu.memory_space<vmem>>, vector<1x16xf32>,
    %c0_14 = arith.constant 0 : index
    %c48 = arith.constant 48 : index
    %13 = vector.load %arg6[%c0_14, %c48] : memref<1x256xf32, #tpu.memory_space<vmem>>, vector<1x16xf32>
    %c6 = arith.constant 6 : index
    %c3_15 = arith.constant 3 : index
    %14 = vector.load %arg5[%c6, %c3_15] : memref<22x22xf32, #tpu.memory_space<vmem>>, vector<1x16xf32>
    tpu.vector_store %arg5[%c6, %c3_15], %13 {strides = array<i32>} : memref<22x22xf32, #tpu.memory_space<vmem>>, vector<1x16xf32>,
    %c0_16 = arith.constant 0 : index
    %c64 = arith.constant 64 : index
    %15 = vector.load %arg6[%c0_16, %c64] : memref<1x256xf32, #tpu.memory_space<vmem>>, vector<1x16xf32>
    %c7 = arith.constant 7 : index
    %c3_17 = arith.constant 3 : index
    %16 = vector.load %arg5[%c7, %c3_17] : memref<22x22xf32, #tpu.memory_space<vmem>>, vector<1x16xf32>
    tpu.vector_store %arg5[%c7, %c3_17], %15 {strides = array<i32>} : memref<22x22xf32, #tpu.memory_space<vmem>>, vector<1x16xf32>,
    %c0_18 = arith.constant 0 : index
    %c80 = arith.constant 80 : index
    %17 = vector.load %arg6[%c0_18, %c80] : memref<1x256xf32, #tpu.memory_space<vmem>>, vector<1x16xf32>
    %c8 = arith.constant 8 : index
    %c3_19 = arith.constant 3 : index
    %18 = vector.load %arg5[%c8, %c3_19] : memref<22x22xf32, #tpu.memory_space<vmem>>, vector<1x16xf32>
    tpu.vector_store %arg5[%c8, %c3_19], %17 {strides = array<i32>} : memref<22x22xf32, #tpu.memory_space<vmem>>, vector<1x16xf32>,
    %c0_20 = arith.constant 0 : index
    %c96 = arith.constant 96 : index
    %19 = vector.load %arg6[%c0_20, %c96] : memref<1x256xf32, #tpu.memory_space<vmem>>, vector<1x16xf32>
    %c9 = arith.constant 9 : index
    %c3_21 = arith.constant 3 : index
    %20 = vector.load %arg5[%c9, %c3_21] : memref<22x22xf32, #tpu.memory_space<vmem>>, vector<1x16xf32>
    tpu.vector_store %arg5[%c9, %c3_21], %19 {strides = array<i32>} : memref<22x22xf32, #tpu.memory_space<vmem>>, vector<1x16xf32>,
    %c0_22 = arith.constant 0 : index
    %c112 = arith.constant 112 : index
    %21 = vector.load %arg6[%c0_22, %c112] : memref<1x256xf32, #tpu.memory_space<vmem>>, vector<1x16xf32>
    %c10 = arith.constant 10 : index
    %c3_23 = arith.constant 3 : index
    %22 = vector.load %arg5[%c10, %c3_23] : memref<22x22xf32, #tpu.memory_space<vmem>>, vector<1x16xf32>
    tpu.vector_store %arg5[%c10, %c3_23], %21 {strides = array<i32>} : memref<22x22xf32, #tpu.memory_space<vmem>>, vector<1x16xf32>,
    %c0_24 = arith.constant 0 : index
    %c128 = arith.constant 128 : index
    %23 = vector.load %arg6[%c0_24, %c128] : memref<1x256xf32, #tpu.memory_space<vmem>>, vector<1x16xf32>
    %c11 = arith.constant 11 : index
    %c3_25 = arith.constant 3 : index
    %24 = vector.load %arg5[%c11, %c3_25] : memref<22x22xf32, #tpu.memory_space<vmem>>, vector<1x16xf32>
    tpu.vector_store %arg5[%c11, %c3_25], %23 {strides = array<i32>} : memref<22x22xf32, #tpu.memory_space<vmem>>, vector<1x16xf32>,
    %c0_26 = arith.constant 0 : index
    %c144 = arith.constant 144 : index
    %25 = vector.load %arg6[%c0_26, %c144] : memref<1x256xf32, #tpu.memory_space<vmem>>, vector<1x16xf32>
    %c12 = arith.constant 12 : index
    %c3_27 = arith.constant 3 : index
    %26 = vector.load %arg5[%c12, %c3_27] : memref<22x22xf32, #tpu.memory_space<vmem>>, vector<1x16xf32>
    tpu.vector_store %arg5[%c12, %c3_27], %25 {strides = array<i32>} : memref<22x22xf32, #tpu.memory_space<vmem>>, vector<1x16xf32>,
    %c0_28 = arith.constant 0 : index
    %c160 = arith.constant 160 : index
    %27 = vector.load %arg6[%c0_28, %c160] : memref<1x256xf32, #tpu.memory_space<vmem>>, vector<1x16xf32>
    %c13 = arith.constant 13 : index
    %c3_29 = arith.constant 3 : index
    %28 = vector.load %arg5[%c13, %c3_29] : memref<22x22xf32, #tpu.memory_space<vmem>>, vector<1x16xf32>
    tpu.vector_store %arg5[%c13, %c3_29], %27 {strides = array<i32>} : memref<22x22xf32, #tpu.memory_space<vmem>>, vector<1x16xf32>,
    %c0_30 = arith.constant 0 : index
    %c176 = arith.constant 176 : index
    %29 = vector.load %arg6[%c0_30, %c176] : memref<1x256xf32, #tpu.memory_space<vmem>>, vector<1x16xf32>
    %c14 = arith.constant 14 : index
    %c3_31 = arith.constant 3 : index
    %30 = vector.load %arg5[%c14, %c3_31] : memref<22x22xf32, #tpu.memory_space<vmem>>, vector<1x16xf32>
    tpu.vector_store %arg5[%c14, %c3_31], %29 {strides = array<i32>} : memref<22x22xf32, #tpu.memory_space<vmem>>, vector<1x16xf32>,
    %c0_32 = arith.constant 0 : index
    %c192 = arith.constant 192 : index
    %31 = vector.load %arg6[%c0_32, %c192] : memref<1x256xf32, #tpu.memory_space<vmem>>, vector<1x16xf32>
    %c15 = arith.constant 15 : index
    %c3_33 = arith.constant 3 : index
    %32 = vector.load %arg5[%c15, %c3_33] : memref<22x22xf32, #tpu.memory_space<vmem>>, vector<1x16xf32>
    tpu.vector_store %arg5[%c15, %c3_33], %31 {strides = array<i32>} : memref<22x22xf32, #tpu.memory_space<vmem>>, vector<1x16xf32>,
    %c0_34 = arith.constant 0 : index
    %c208 = arith.constant 208 : index
    %33 = vector.load %arg6[%c0_34, %c208] : memref<1x256xf32, #tpu.memory_space<vmem>>, vector<1x16xf32>
    %c16_35 = arith.constant 16 : index
    %c3_36 = arith.constant 3 : index
    %34 = vector.load %arg5[%c16_35, %c3_36] : memref<22x22xf32, #tpu.memory_space<vmem>>, vector<1x16xf32>
    tpu.vector_store %arg5[%c16_35, %c3_36], %33 {strides = array<i32>} : memref<22x22xf32, #tpu.memory_space<vmem>>, vector<1x16xf32>,
    %c0_37 = arith.constant 0 : index
    %c224 = arith.constant 224 : index
    %35 = vector.load %arg6[%c0_37, %c224] : memref<1x256xf32, #tpu.memory_space<vmem>>, vector<1x16xf32>
    %c17 = arith.constant 17 : index
    %c3_38 = arith.constant 3 : index
    %36 = vector.load %arg5[%c17, %c3_38] : memref<22x22xf32, #tpu.memory_space<vmem>>, vector<1x16xf32>
    tpu.vector_store %arg5[%c17, %c3_38], %35 {strides = array<i32>} : memref<22x22xf32, #tpu.memory_space<vmem>>, vector<1x16xf32>,
    %c0_39 = arith.constant 0 : index
    %c240 = arith.constant 240 : index
    %37 = vector.load %arg6[%c0_39, %c240] : memref<1x256xf32, #tpu.memory_space<vmem>>, vector<1x16xf32>
    %c18 = arith.constant 18 : index
    %c3_40 = arith.constant 3 : index
    %38 = vector.load %arg5[%c18, %c3_40] : memref<22x22xf32, #tpu.memory_space<vmem>>, vector<1x16xf32>
    tpu.vector_store %arg5[%c18, %c3_40], %37 {strides = array<i32>} : memref<22x22xf32, #tpu.memory_space<vmem>>, vector<1x16xf32>,
    %cst_41 = arith.constant 0.000000e+00 : f32
    %39 = vector.broadcast %cst_41 : f32 to vector<16x16xf32>
    %c0_42 = arith.constant 0 : index
    %c0_43 = arith.constant 0 : index
    %40 = vector.load %arg5[%c0_42, %c0_43] : memref<22x22xf32, #tpu.memory_space<vmem>>, vector<22x16xf32>
    %c0_44 = arith.constant 0 : index
    %41 = memref.load %arg2[%c0_44] : memref<49xf32, #tpu.memory_space<smem>>
    %42 = vector.extract_strided_slice %40 {offsets = [0, 0], sizes = [16, 16], strides = [1, 1]} : vector<22x16xf32> to vector<16x16xf32>
    %43 = vector.broadcast %41 : f32 to vector<16x16xf32>
    %44 = arith.mulf %43, %42 : vector<16x16xf32>
    %45 = arith.addf %39, %44 : vector<16x16xf32>
    %c7_45 = arith.constant 7 : index
    %46 = memref.load %arg2[%c7_45] : memref<49xf32, #tpu.memory_space<smem>>
    %47 = vector.extract_strided_slice %40 {offsets = [1, 0], sizes = [16, 16], strides = [1, 1]} : vector<22x16xf32> to vector<16x16xf32>
    %48 = vector.broadcast %46 : f32 to vector<16x16xf32>
    %49 = arith.mulf %48, %47 : vector<16x16xf32>
    %50 = arith.addf %45, %49 : vector<16x16xf32>
    %c14_46 = arith.constant 14 : index
    %51 = memref.load %arg2[%c14_46] : memref<49xf32, #tpu.memory_space<smem>>
    %52 = vector.extract_strided_slice %40 {offsets = [2, 0], sizes = [16, 16], strides = [1, 1]} : vector<22x16xf32> to vector<16x16xf32>
    %53 = vector.broadcast %51 : f32 to vector<16x16xf32>
    %54 = arith.mulf %53, %52 : vector<16x16xf32>
    %55 = arith.addf %50, %54 : vector<16x16xf32>
    %c21 = arith.constant 21 : index
    %56 = memref.load %arg2[%c21] : memref<49xf32, #tpu.memory_space<smem>>
    %57 = vector.extract_strided_slice %40 {offsets = [3, 0], sizes = [16, 16], strides = [1, 1]} : vector<22x16xf32> to vector<16x16xf32>
    %58 = vector.broadcast %56 : f32 to vector<16x16xf32>
    %59 = arith.mulf %58, %57 : vector<16x16xf32>
    %60 = arith.addf %55, %59 : vector<16x16xf32>
    %c28 = arith.constant 28 : index
    %61 = memref.load %arg2[%c28] : memref<49xf32, #tpu.memory_space<smem>>
    %62 = vector.extract_strided_slice %40 {offsets = [4, 0], sizes = [16, 16], strides = [1, 1]} : vector<22x16xf32> to vector<16x16xf32>
    %63 = vector.broadcast %61 : f32 to vector<16x16xf32>
    %64 = arith.mulf %63, %62 : vector<16x16xf32>
    %65 = arith.addf %60, %64 : vector<16x16xf32>
    %c35 = arith.constant 35 : index
    %66 = memref.load %arg2[%c35] : memref<49xf32, #tpu.memory_space<smem>>
    %67 = vector.extract_strided_slice %40 {offsets = [5, 0], sizes = [16, 16], strides = [1, 1]} : vector<22x16xf32> to vector<16x16xf32>
    %68 = vector.broadcast %66 : f32 to vector<16x16xf32>
    %69 = arith.mulf %68, %67 : vector<16x16xf32>
    %70 = arith.addf %65, %69 : vector<16x16xf32>
    %c42 = arith.constant 42 : index
    %71 = memref.load %arg2[%c42] : memref<49xf32, #tpu.memory_space<smem>>
    %72 = vector.extract_strided_slice %40 {offsets = [6, 0], sizes = [16, 16], strides = [1, 1]} : vector<22x16xf32> to vector<16x16xf32>
    %73 = vector.broadcast %71 : f32 to vector<16x16xf32>
    %74 = arith.mulf %73, %72 : vector<16x16xf32>
    %75 = arith.addf %70, %74 : vector<16x16xf32>
    %c0_47 = arith.constant 0 : index
    %c1 = arith.constant 1 : index
    %76 = vector.load %arg5[%c0_47, %c1] : memref<22x22xf32, #tpu.memory_space<vmem>>, vector<22x16xf32>
    %c1_48 = arith.constant 1 : index
    %77 = memref.load %arg2[%c1_48] : memref<49xf32, #tpu.memory_space<smem>>
    %78 = vector.extract_strided_slice %76 {offsets = [0, 0], sizes = [16, 16], strides = [1, 1]} : vector<22x16xf32> to vector<16x16xf32>
    %79 = vector.broadcast %77 : f32 to vector<16x16xf32>
    %80 = arith.mulf %79, %78 : vector<16x16xf32>
    %81 = arith.addf %75, %80 : vector<16x16xf32>
    %c8_49 = arith.constant 8 : index
    %82 = memref.load %arg2[%c8_49] : memref<49xf32, #tpu.memory_space<smem>>
    %83 = vector.extract_strided_slice %76 {offsets = [1, 0], sizes = [16, 16], strides = [1, 1]} : vector<22x16xf32> to vector<16x16xf32>
    %84 = vector.broadcast %82 : f32 to vector<16x16xf32>
    %85 = arith.mulf %84, %83 : vector<16x16xf32>
    %86 = arith.addf %81, %85 : vector<16x16xf32>
    %c15_50 = arith.constant 15 : index
    %87 = memref.load %arg2[%c15_50] : memref<49xf32, #tpu.memory_space<smem>>
    %88 = vector.extract_strided_slice %76 {offsets = [2, 0], sizes = [16, 16], strides = [1, 1]} : vector<22x16xf32> to vector<16x16xf32>
    %89 = vector.broadcast %87 : f32 to vector<16x16xf32>
    %90 = arith.mulf %89, %88 : vector<16x16xf32>
    %91 = arith.addf %86, %90 : vector<16x16xf32>
    %c22 = arith.constant 22 : index
    %92 = memref.load %arg2[%c22] : memref<49xf32, #tpu.memory_space<smem>>
    %93 = vector.extract_strided_slice %76 {offsets = [3, 0], sizes = [16, 16], strides = [1, 1]} : vector<22x16xf32> to vector<16x16xf32>
    %94 = vector.broadcast %92 : f32 to vector<16x16xf32>
    %95 = arith.mulf %94, %93 : vector<16x16xf32>
    %96 = arith.addf %91, %95 : vector<16x16xf32>
    %c29 = arith.constant 29 : index
    %97 = memref.load %arg2[%c29] : memref<49xf32, #tpu.memory_space<smem>>
    %98 = vector.extract_strided_slice %76 {offsets = [4, 0], sizes = [16, 16], strides = [1, 1]} : vector<22x16xf32> to vector<16x16xf32>
    %99 = vector.broadcast %97 : f32 to vector<16x16xf32>
    %100 = arith.mulf %99, %98 : vector<16x16xf32>
    %101 = arith.addf %96, %100 : vector<16x16xf32>
    %c36 = arith.constant 36 : index
    %102 = memref.load %arg2[%c36] : memref<49xf32, #tpu.memory_space<smem>>
    %103 = vector.extract_strided_slice %76 {offsets = [5, 0], sizes = [16, 16], strides = [1, 1]} : vector<22x16xf32> to vector<16x16xf32>
    %104 = vector.broadcast %102 : f32 to vector<16x16xf32>
    %105 = arith.mulf %104, %103 : vector<16x16xf32>
    %106 = arith.addf %101, %105 : vector<16x16xf32>
    %c43 = arith.constant 43 : index
    %107 = memref.load %arg2[%c43] : memref<49xf32, #tpu.memory_space<smem>>
    %108 = vector.extract_strided_slice %76 {offsets = [6, 0], sizes = [16, 16], strides = [1, 1]} : vector<22x16xf32> to vector<16x16xf32>
    %109 = vector.broadcast %107 : f32 to vector<16x16xf32>
    %110 = arith.mulf %109, %108 : vector<16x16xf32>
    %111 = arith.addf %106, %110 : vector<16x16xf32>
    %c0_51 = arith.constant 0 : index
    %c2 = arith.constant 2 : index
    %112 = vector.load %arg5[%c0_51, %c2] : memref<22x22xf32, #tpu.memory_space<vmem>>, vector<22x16xf32>
    %c2_52 = arith.constant 2 : index
    %113 = memref.load %arg2[%c2_52] : memref<49xf32, #tpu.memory_space<smem>>
    %114 = vector.extract_strided_slice %112 {offsets = [0, 0], sizes = [16, 16], strides = [1, 1]} : vector<22x16xf32> to vector<16x16xf32>
    %115 = vector.broadcast %113 : f32 to vector<16x16xf32>
    %116 = arith.mulf %115, %114 : vector<16x16xf32>
    %117 = arith.addf %111, %116 : vector<16x16xf32>
    %c9_53 = arith.constant 9 : index
    %118 = memref.load %arg2[%c9_53] : memref<49xf32, #tpu.memory_space<smem>>
    %119 = vector.extract_strided_slice %112 {offsets = [1, 0], sizes = [16, 16], strides = [1, 1]} : vector<22x16xf32> to vector<16x16xf32>
    %120 = vector.broadcast %118 : f32 to vector<16x16xf32>
    %121 = arith.mulf %120, %119 : vector<16x16xf32>
    %122 = arith.addf %117, %121 : vector<16x16xf32>
    %c16_54 = arith.constant 16 : index
    %123 = memref.load %arg2[%c16_54] : memref<49xf32, #tpu.memory_space<smem>>
    %124 = vector.extract_strided_slice %112 {offsets = [2, 0], sizes = [16, 16], strides = [1, 1]} : vector<22x16xf32> to vector<16x16xf32>
    %125 = vector.broadcast %123 : f32 to vector<16x16xf32>
    %126 = arith.mulf %125, %124 : vector<16x16xf32>
    %127 = arith.addf %122, %126 : vector<16x16xf32>
    %c23 = arith.constant 23 : index
    %128 = memref.load %arg2[%c23] : memref<49xf32, #tpu.memory_space<smem>>
    %129 = vector.extract_strided_slice %112 {offsets = [3, 0], sizes = [16, 16], strides = [1, 1]} : vector<22x16xf32> to vector<16x16xf32>
    %130 = vector.broadcast %128 : f32 to vector<16x16xf32>
    %131 = arith.mulf %130, %129 : vector<16x16xf32>
    %132 = arith.addf %127, %131 : vector<16x16xf32>
    %c30 = arith.constant 30 : index
    %133 = memref.load %arg2[%c30] : memref<49xf32, #tpu.memory_space<smem>>
    %134 = vector.extract_strided_slice %112 {offsets = [4, 0], sizes = [16, 16], strides = [1, 1]} : vector<22x16xf32> to vector<16x16xf32>
    %135 = vector.broadcast %133 : f32 to vector<16x16xf32>
    %136 = arith.mulf %135, %134 : vector<16x16xf32>
    %137 = arith.addf %132, %136 : vector<16x16xf32>
    %c37 = arith.constant 37 : index
    %138 = memref.load %arg2[%c37] : memref<49xf32, #tpu.memory_space<smem>>
    %139 = vector.extract_strided_slice %112 {offsets = [5, 0], sizes = [16, 16], strides = [1, 1]} : vector<22x16xf32> to vector<16x16xf32>
    %140 = vector.broadcast %138 : f32 to vector<16x16xf32>
    %141 = arith.mulf %140, %139 : vector<16x16xf32>
    %142 = arith.addf %137, %141 : vector<16x16xf32>
    %c44 = arith.constant 44 : index
    %143 = memref.load %arg2[%c44] : memref<49xf32, #tpu.memory_space<smem>>
    %144 = vector.extract_strided_slice %112 {offsets = [6, 0], sizes = [16, 16], strides = [1, 1]} : vector<22x16xf32> to vector<16x16xf32>
    %145 = vector.broadcast %143 : f32 to vector<16x16xf32>
    %146 = arith.mulf %145, %144 : vector<16x16xf32>
    %147 = arith.addf %142, %146 : vector<16x16xf32>
    %c0_55 = arith.constant 0 : index
    %c3_56 = arith.constant 3 : index
    %148 = vector.load %arg5[%c0_55, %c3_56] : memref<22x22xf32, #tpu.memory_space<vmem>>, vector<22x16xf32>
    %c3_57 = arith.constant 3 : index
    %149 = memref.load %arg2[%c3_57] : memref<49xf32, #tpu.memory_space<smem>>
    %150 = vector.extract_strided_slice %148 {offsets = [0, 0], sizes = [16, 16], strides = [1, 1]} : vector<22x16xf32> to vector<16x16xf32>
    %151 = vector.broadcast %149 : f32 to vector<16x16xf32>
    %152 = arith.mulf %151, %150 : vector<16x16xf32>
    %153 = arith.addf %147, %152 : vector<16x16xf32>
    %c10_58 = arith.constant 10 : index
    %154 = memref.load %arg2[%c10_58] : memref<49xf32, #tpu.memory_space<smem>>
    %155 = vector.extract_strided_slice %148 {offsets = [1, 0], sizes = [16, 16], strides = [1, 1]} : vector<22x16xf32> to vector<16x16xf32>
    %156 = vector.broadcast %154 : f32 to vector<16x16xf32>
    %157 = arith.mulf %156, %155 : vector<16x16xf32>
    %158 = arith.addf %153, %157 : vector<16x16xf32>
    %c17_59 = arith.constant 17 : index
    %159 = memref.load %arg2[%c17_59] : memref<49xf32, #tpu.memory_space<smem>>
    %160 = vector.extract_strided_slice %148 {offsets = [2, 0], sizes = [16, 16], strides = [1, 1]} : vector<22x16xf32> to vector<16x16xf32>
    %161 = vector.broadcast %159 : f32 to vector<16x16xf32>
    %162 = arith.mulf %161, %160 : vector<16x16xf32>
    %163 = arith.addf %158, %162 : vector<16x16xf32>
    %c24 = arith.constant 24 : index
    %164 = memref.load %arg2[%c24] : memref<49xf32, #tpu.memory_space<smem>>
    %165 = vector.extract_strided_slice %148 {offsets = [3, 0], sizes = [16, 16], strides = [1, 1]} : vector<22x16xf32> to vector<16x16xf32>
    %166 = vector.broadcast %164 : f32 to vector<16x16xf32>
    %167 = arith.mulf %166, %165 : vector<16x16xf32>
    %168 = arith.addf %163, %167 : vector<16x16xf32>
    %c31 = arith.constant 31 : index
    %169 = memref.load %arg2[%c31] : memref<49xf32, #tpu.memory_space<smem>>
    %170 = vector.extract_strided_slice %148 {offsets = [4, 0], sizes = [16, 16], strides = [1, 1]} : vector<22x16xf32> to vector<16x16xf32>
    %171 = vector.broadcast %169 : f32 to vector<16x16xf32>
    %172 = arith.mulf %171, %170 : vector<16x16xf32>
    %173 = arith.addf %168, %172 : vector<16x16xf32>
    %c38 = arith.constant 38 : index
    %174 = memref.load %arg2[%c38] : memref<49xf32, #tpu.memory_space<smem>>
    %175 = vector.extract_strided_slice %148 {offsets = [5, 0], sizes = [16, 16], strides = [1, 1]} : vector<22x16xf32> to vector<16x16xf32>
    %176 = vector.broadcast %174 : f32 to vector<16x16xf32>
    %177 = arith.mulf %176, %175 : vector<16x16xf32>
    %178 = arith.addf %173, %177 : vector<16x16xf32>
    %c45 = arith.constant 45 : index
    %179 = memref.load %arg2[%c45] : memref<49xf32, #tpu.memory_space<smem>>
    %180 = vector.extract_strided_slice %148 {offsets = [6, 0], sizes = [16, 16], strides = [1, 1]} : vector<22x16xf32> to vector<16x16xf32>
    %181 = vector.broadcast %179 : f32 to vector<16x16xf32>
    %182 = arith.mulf %181, %180 : vector<16x16xf32>
    %183 = arith.addf %178, %182 : vector<16x16xf32>
    %c0_60 = arith.constant 0 : index
    %c4_61 = arith.constant 4 : index
    %184 = vector.load %arg5[%c0_60, %c4_61] : memref<22x22xf32, #tpu.memory_space<vmem>>, vector<22x16xf32>
    %c4_62 = arith.constant 4 : index
    %185 = memref.load %arg2[%c4_62] : memref<49xf32, #tpu.memory_space<smem>>
    %186 = vector.extract_strided_slice %184 {offsets = [0, 0], sizes = [16, 16], strides = [1, 1]} : vector<22x16xf32> to vector<16x16xf32>
    %187 = vector.broadcast %185 : f32 to vector<16x16xf32>
    %188 = arith.mulf %187, %186 : vector<16x16xf32>
    %189 = arith.addf %183, %188 : vector<16x16xf32>
    %c11_63 = arith.constant 11 : index
    %190 = memref.load %arg2[%c11_63] : memref<49xf32, #tpu.memory_space<smem>>
    %191 = vector.extract_strided_slice %184 {offsets = [1, 0], sizes = [16, 16], strides = [1, 1]} : vector<22x16xf32> to vector<16x16xf32>
    %192 = vector.broadcast %190 : f32 to vector<16x16xf32>
    %193 = arith.mulf %192, %191 : vector<16x16xf32>
    %194 = arith.addf %189, %193 : vector<16x16xf32>
    %c18_64 = arith.constant 18 : index
    %195 = memref.load %arg2[%c18_64] : memref<49xf32, #tpu.memory_space<smem>>
    %196 = vector.extract_strided_slice %184 {offsets = [2, 0], sizes = [16, 16], strides = [1, 1]} : vector<22x16xf32> to vector<16x16xf32>
    %197 = vector.broadcast %195 : f32 to vector<16x16xf32>
    %198 = arith.mulf %197, %196 : vector<16x16xf32>
    %199 = arith.addf %194, %198 : vector<16x16xf32>
    %c25 = arith.constant 25 : index
    %200 = memref.load %arg2[%c25] : memref<49xf32, #tpu.memory_space<smem>>
    %201 = vector.extract_strided_slice %184 {offsets = [3, 0], sizes = [16, 16], strides = [1, 1]} : vector<22x16xf32> to vector<16x16xf32>
    %202 = vector.broadcast %200 : f32 to vector<16x16xf32>
    %203 = arith.mulf %202, %201 : vector<16x16xf32>
    %204 = arith.addf %199, %203 : vector<16x16xf32>
    %c32_65 = arith.constant 32 : index
    %205 = memref.load %arg2[%c32_65] : memref<49xf32, #tpu.memory_space<smem>>
    %206 = vector.extract_strided_slice %184 {offsets = [4, 0], sizes = [16, 16], strides = [1, 1]} : vector<22x16xf32> to vector<16x16xf32>
    %207 = vector.broadcast %205 : f32 to vector<16x16xf32>
    %208 = arith.mulf %207, %206 : vector<16x16xf32>
    %209 = arith.addf %204, %208 : vector<16x16xf32>
    %c39 = arith.constant 39 : index
    %210 = memref.load %arg2[%c39] : memref<49xf32, #tpu.memory_space<smem>>
    %211 = vector.extract_strided_slice %184 {offsets = [5, 0], sizes = [16, 16], strides = [1, 1]} : vector<22x16xf32> to vector<16x16xf32>
    %212 = vector.broadcast %210 : f32 to vector<16x16xf32>
    %213 = arith.mulf %212, %211 : vector<16x16xf32>
    %214 = arith.addf %209, %213 : vector<16x16xf32>
    %c46 = arith.constant 46 : index
    %215 = memref.load %arg2[%c46] : memref<49xf32, #tpu.memory_space<smem>>
    %216 = vector.extract_strided_slice %184 {offsets = [6, 0], sizes = [16, 16], strides = [1, 1]} : vector<22x16xf32> to vector<16x16xf32>
    %217 = vector.broadcast %215 : f32 to vector<16x16xf32>
    %218 = arith.mulf %217, %216 : vector<16x16xf32>
    %219 = arith.addf %214, %218 : vector<16x16xf32>
    %c0_66 = arith.constant 0 : index
    %c5_67 = arith.constant 5 : index
    %220 = vector.load %arg5[%c0_66, %c5_67] : memref<22x22xf32, #tpu.memory_space<vmem>>, vector<22x16xf32>
    %c5_68 = arith.constant 5 : index
    %221 = memref.load %arg2[%c5_68] : memref<49xf32, #tpu.memory_space<smem>>
    %222 = vector.extract_strided_slice %220 {offsets = [0, 0], sizes = [16, 16], strides = [1, 1]} : vector<22x16xf32> to vector<16x16xf32>
    %223 = vector.broadcast %221 : f32 to vector<16x16xf32>
    %224 = arith.mulf %223, %222 : vector<16x16xf32>
    %225 = arith.addf %219, %224 : vector<16x16xf32>
    %c12_69 = arith.constant 12 : index
    %226 = memref.load %arg2[%c12_69] : memref<49xf32, #tpu.memory_space<smem>>
    %227 = vector.extract_strided_slice %220 {offsets = [1, 0], sizes = [16, 16], strides = [1, 1]} : vector<22x16xf32> to vector<16x16xf32>
    %228 = vector.broadcast %226 : f32 to vector<16x16xf32>
    %229 = arith.mulf %228, %227 : vector<16x16xf32>
    %230 = arith.addf %225, %229 : vector<16x16xf32>
    %c19 = arith.constant 19 : index
    %231 = memref.load %arg2[%c19] : memref<49xf32, #tpu.memory_space<smem>>
    %232 = vector.extract_strided_slice %220 {offsets = [2, 0], sizes = [16, 16], strides = [1, 1]} : vector<22x16xf32> to vector<16x16xf32>
    %233 = vector.broadcast %231 : f32 to vector<16x16xf32>
    %234 = arith.mulf %233, %232 : vector<16x16xf32>
    %235 = arith.addf %230, %234 : vector<16x16xf32>
    %c26 = arith.constant 26 : index
    %236 = memref.load %arg2[%c26] : memref<49xf32, #tpu.memory_space<smem>>
    %237 = vector.extract_strided_slice %220 {offsets = [3, 0], sizes = [16, 16], strides = [1, 1]} : vector<22x16xf32> to vector<16x16xf32>
    %238 = vector.broadcast %236 : f32 to vector<16x16xf32>
    %239 = arith.mulf %238, %237 : vector<16x16xf32>
    %240 = arith.addf %235, %239 : vector<16x16xf32>
    %c33 = arith.constant 33 : index
    %241 = memref.load %arg2[%c33] : memref<49xf32, #tpu.memory_space<smem>>
    %242 = vector.extract_strided_slice %220 {offsets = [4, 0], sizes = [16, 16], strides = [1, 1]} : vector<22x16xf32> to vector<16x16xf32>
    %243 = vector.broadcast %241 : f32 to vector<16x16xf32>
    %244 = arith.mulf %243, %242 : vector<16x16xf32>
    %245 = arith.addf %240, %244 : vector<16x16xf32>
    %c40 = arith.constant 40 : index
    %246 = memref.load %arg2[%c40] : memref<49xf32, #tpu.memory_space<smem>>
    %247 = vector.extract_strided_slice %220 {offsets = [5, 0], sizes = [16, 16], strides = [1, 1]} : vector<22x16xf32> to vector<16x16xf32>
    %248 = vector.broadcast %246 : f32 to vector<16x16xf32>
    %249 = arith.mulf %248, %247 : vector<16x16xf32>
    %250 = arith.addf %245, %249 : vector<16x16xf32>
    %c47 = arith.constant 47 : index
    %251 = memref.load %arg2[%c47] : memref<49xf32, #tpu.memory_space<smem>>
    %252 = vector.extract_strided_slice %220 {offsets = [6, 0], sizes = [16, 16], strides = [1, 1]} : vector<22x16xf32> to vector<16x16xf32>
    %253 = vector.broadcast %251 : f32 to vector<16x16xf32>
    %254 = arith.mulf %253, %252 : vector<16x16xf32>
    %255 = arith.addf %250, %254 : vector<16x16xf32>
    %c0_70 = arith.constant 0 : index
    %c6_71 = arith.constant 6 : index
    %256 = vector.load %arg5[%c0_70, %c6_71] : memref<22x22xf32, #tpu.memory_space<vmem>>, vector<22x16xf32>
    %c6_72 = arith.constant 6 : index
    %257 = memref.load %arg2[%c6_72] : memref<49xf32, #tpu.memory_space<smem>>
    %258 = vector.extract_strided_slice %256 {offsets = [0, 0], sizes = [16, 16], strides = [1, 1]} : vector<22x16xf32> to vector<16x16xf32>
    %259 = vector.broadcast %257 : f32 to vector<16x16xf32>
    %260 = arith.mulf %259, %258 : vector<16x16xf32>
    %261 = arith.addf %255, %260 : vector<16x16xf32>
    %c13_73 = arith.constant 13 : index
    %262 = memref.load %arg2[%c13_73] : memref<49xf32, #tpu.memory_space<smem>>
    %263 = vector.extract_strided_slice %256 {offsets = [1, 0], sizes = [16, 16], strides = [1, 1]} : vector<22x16xf32> to vector<16x16xf32>
    %264 = vector.broadcast %262 : f32 to vector<16x16xf32>
    %265 = arith.mulf %264, %263 : vector<16x16xf32>
    %266 = arith.addf %261, %265 : vector<16x16xf32>
    %c20 = arith.constant 20 : index
    %267 = memref.load %arg2[%c20] : memref<49xf32, #tpu.memory_space<smem>>
    %268 = vector.extract_strided_slice %256 {offsets = [2, 0], sizes = [16, 16], strides = [1, 1]} : vector<22x16xf32> to vector<16x16xf32>
    %269 = vector.broadcast %267 : f32 to vector<16x16xf32>
    %270 = arith.mulf %269, %268 : vector<16x16xf32>
    %271 = arith.addf %266, %270 : vector<16x16xf32>
    %c27 = arith.constant 27 : index
    %272 = memref.load %arg2[%c27] : memref<49xf32, #tpu.memory_space<smem>>
    %273 = vector.extract_strided_slice %256 {offsets = [3, 0], sizes = [16, 16], strides = [1, 1]} : vector<22x16xf32> to vector<16x16xf32>
    %274 = vector.broadcast %272 : f32 to vector<16x16xf32>
    %275 = arith.mulf %274, %273 : vector<16x16xf32>
    %276 = arith.addf %271, %275 : vector<16x16xf32>
    %c34 = arith.constant 34 : index
    %277 = memref.load %arg2[%c34] : memref<49xf32, #tpu.memory_space<smem>>
    %278 = vector.extract_strided_slice %256 {offsets = [4, 0], sizes = [16, 16], strides = [1, 1]} : vector<22x16xf32> to vector<16x16xf32>
    %279 = vector.broadcast %277 : f32 to vector<16x16xf32>
    %280 = arith.mulf %279, %278 : vector<16x16xf32>
    %281 = arith.addf %276, %280 : vector<16x16xf32>
    %c41 = arith.constant 41 : index
    %282 = memref.load %arg2[%c41] : memref<49xf32, #tpu.memory_space<smem>>
    %283 = vector.extract_strided_slice %256 {offsets = [5, 0], sizes = [16, 16], strides = [1, 1]} : vector<22x16xf32> to vector<16x16xf32>
    %284 = vector.broadcast %282 : f32 to vector<16x16xf32>
    %285 = arith.mulf %284, %283 : vector<16x16xf32>
    %286 = arith.addf %281, %285 : vector<16x16xf32>
    %c48_74 = arith.constant 48 : index
    %287 = memref.load %arg2[%c48_74] : memref<49xf32, #tpu.memory_space<smem>>
    %288 = vector.extract_strided_slice %256 {offsets = [6, 0], sizes = [16, 16], strides = [1, 1]} : vector<22x16xf32> to vector<16x16xf32>
    %289 = vector.broadcast %287 : f32 to vector<16x16xf32>
    %290 = arith.mulf %289, %288 : vector<16x16xf32>
    %291 = arith.addf %286, %290 : vector<16x16xf32>
    %c0_75 = arith.constant 0 : index
    %292 = memref.load %arg3[%c0_75] : memref<1xf32, #tpu.memory_space<smem>>
    %293 = vector.broadcast %292 : f32 to vector<16x16xf32>
    %294 = arith.addf %291, %293 : vector<16x16xf32>
    %295 = arith.negf %294 : vector<16x16xf32>
    %296 = math.exp %295 : vector<16x16xf32>
    %cst_76 = arith.constant 1.000000e+00 : f32
    %297 = vector.broadcast %cst_76 : f32 to vector<16x16xf32>
    %298 = arith.addf %297, %296 : vector<16x16xf32>
    %299 = arith.divf %297, %298 : vector<16x16xf32>
    %300 = vector.extract_strided_slice %299 {offsets = [0, 0], sizes = [1, 16], strides = [1, 1]} : vector<16x16xf32> to vector<1x16xf32>
    %c0_77 = arith.constant 0 : index
    %c0_78 = arith.constant 0 : index
    %301 = vector.load %arg6[%c0_77, %c0_78] : memref<1x256xf32, #tpu.memory_space<vmem>>, vector<1x16xf32>
    tpu.vector_store %arg6[%c0_77, %c0_78], %300 {strides = array<i32>} : memref<1x256xf32, #tpu.memory_space<vmem>>, vector<1x16xf32>,
    %302 = vector.extract_strided_slice %299 {offsets = [1, 0], sizes = [1, 16], strides = [1, 1]} : vector<16x16xf32> to vector<1x16xf32>
    %c0_79 = arith.constant 0 : index
    %c16_80 = arith.constant 16 : index
    %303 = vector.load %arg6[%c0_79, %c16_80] : memref<1x256xf32, #tpu.memory_space<vmem>>, vector<1x16xf32>
    tpu.vector_store %arg6[%c0_79, %c16_80], %302 {strides = array<i32>} : memref<1x256xf32, #tpu.memory_space<vmem>>, vector<1x16xf32>,
    %304 = vector.extract_strided_slice %299 {offsets = [2, 0], sizes = [1, 16], strides = [1, 1]} : vector<16x16xf32> to vector<1x16xf32>
    %c0_81 = arith.constant 0 : index
    %c32_82 = arith.constant 32 : index
    %305 = vector.load %arg6[%c0_81, %c32_82] : memref<1x256xf32, #tpu.memory_space<vmem>>, vector<1x16xf32>
    tpu.vector_store %arg6[%c0_81, %c32_82], %304 {strides = array<i32>} : memref<1x256xf32, #tpu.memory_space<vmem>>, vector<1x16xf32>,
    %306 = vector.extract_strided_slice %299 {offsets = [3, 0], sizes = [1, 16], strides = [1, 1]} : vector<16x16xf32> to vector<1x16xf32>
    %c0_83 = arith.constant 0 : index
    %c48_84 = arith.constant 48 : index
    %307 = vector.load %arg6[%c0_83, %c48_84] : memref<1x256xf32, #tpu.memory_space<vmem>>, vector<1x16xf32>
    tpu.vector_store %arg6[%c0_83, %c48_84], %306 {strides = array<i32>} : memref<1x256xf32, #tpu.memory_space<vmem>>, vector<1x16xf32>,
    %308 = vector.extract_strided_slice %299 {offsets = [4, 0], sizes = [1, 16], strides = [1, 1]} : vector<16x16xf32> to vector<1x16xf32>
    %c0_85 = arith.constant 0 : index
    %c64_86 = arith.constant 64 : index
    %309 = vector.load %arg6[%c0_85, %c64_86] : memref<1x256xf32, #tpu.memory_space<vmem>>, vector<1x16xf32>
    tpu.vector_store %arg6[%c0_85, %c64_86], %308 {strides = array<i32>} : memref<1x256xf32, #tpu.memory_space<vmem>>, vector<1x16xf32>,
    %310 = vector.extract_strided_slice %299 {offsets = [5, 0], sizes = [1, 16], strides = [1, 1]} : vector<16x16xf32> to vector<1x16xf32>
    %c0_87 = arith.constant 0 : index
    %c80_88 = arith.constant 80 : index
    %311 = vector.load %arg6[%c0_87, %c80_88] : memref<1x256xf32, #tpu.memory_space<vmem>>, vector<1x16xf32>
    tpu.vector_store %arg6[%c0_87, %c80_88], %310 {strides = array<i32>} : memref<1x256xf32, #tpu.memory_space<vmem>>, vector<1x16xf32>,
    %312 = vector.extract_strided_slice %299 {offsets = [6, 0], sizes = [1, 16], strides = [1, 1]} : vector<16x16xf32> to vector<1x16xf32>
    %c0_89 = arith.constant 0 : index
    %c96_90 = arith.constant 96 : index
    %313 = vector.load %arg6[%c0_89, %c96_90] : memref<1x256xf32, #tpu.memory_space<vmem>>, vector<1x16xf32>
    tpu.vector_store %arg6[%c0_89, %c96_90], %312 {strides = array<i32>} : memref<1x256xf32, #tpu.memory_space<vmem>>, vector<1x16xf32>,
    %314 = vector.extract_strided_slice %299 {offsets = [7, 0], sizes = [1, 16], strides = [1, 1]} : vector<16x16xf32> to vector<1x16xf32>
    %c0_91 = arith.constant 0 : index
    %c112_92 = arith.constant 112 : index
    %315 = vector.load %arg6[%c0_91, %c112_92] : memref<1x256xf32, #tpu.memory_space<vmem>>, vector<1x16xf32>
    tpu.vector_store %arg6[%c0_91, %c112_92], %314 {strides = array<i32>} : memref<1x256xf32, #tpu.memory_space<vmem>>, vector<1x16xf32>,
    %316 = vector.extract_strided_slice %299 {offsets = [8, 0], sizes = [1, 16], strides = [1, 1]} : vector<16x16xf32> to vector<1x16xf32>
    %c0_93 = arith.constant 0 : index
    %c128_94 = arith.constant 128 : index
    %317 = vector.load %arg6[%c0_93, %c128_94] : memref<1x256xf32, #tpu.memory_space<vmem>>, vector<1x16xf32>
    tpu.vector_store %arg6[%c0_93, %c128_94], %316 {strides = array<i32>} : memref<1x256xf32, #tpu.memory_space<vmem>>, vector<1x16xf32>,
    %318 = vector.extract_strided_slice %299 {offsets = [9, 0], sizes = [1, 16], strides = [1, 1]} : vector<16x16xf32> to vector<1x16xf32>
    %c0_95 = arith.constant 0 : index
    %c144_96 = arith.constant 144 : index
    %319 = vector.load %arg6[%c0_95, %c144_96] : memref<1x256xf32, #tpu.memory_space<vmem>>, vector<1x16xf32>
    tpu.vector_store %arg6[%c0_95, %c144_96], %318 {strides = array<i32>} : memref<1x256xf32, #tpu.memory_space<vmem>>, vector<1x16xf32>,
    %320 = vector.extract_strided_slice %299 {offsets = [10, 0], sizes = [1, 16], strides = [1, 1]} : vector<16x16xf32> to vector<1x16xf32>
    %c0_97 = arith.constant 0 : index
    %c160_98 = arith.constant 160 : index
    %321 = vector.load %arg6[%c0_97, %c160_98] : memref<1x256xf32, #tpu.memory_space<vmem>>, vector<1x16xf32>
    tpu.vector_store %arg6[%c0_97, %c160_98], %320 {strides = array<i32>} : memref<1x256xf32, #tpu.memory_space<vmem>>, vector<1x16xf32>,
    %322 = vector.extract_strided_slice %299 {offsets = [11, 0], sizes = [1, 16], strides = [1, 1]} : vector<16x16xf32> to vector<1x16xf32>
    %c0_99 = arith.constant 0 : index
    %c176_100 = arith.constant 176 : index
    %323 = vector.load %arg6[%c0_99, %c176_100] : memref<1x256xf32, #tpu.memory_space<vmem>>, vector<1x16xf32>
    tpu.vector_store %arg6[%c0_99, %c176_100], %322 {strides = array<i32>} : memref<1x256xf32, #tpu.memory_space<vmem>>, vector<1x16xf32>,
    %324 = vector.extract_strided_slice %299 {offsets = [12, 0], sizes = [1, 16], strides = [1, 1]} : vector<16x16xf32> to vector<1x16xf32>
    %c0_101 = arith.constant 0 : index
    %c192_102 = arith.constant 192 : index
    %325 = vector.load %arg6[%c0_101, %c192_102] : memref<1x256xf32, #tpu.memory_space<vmem>>, vector<1x16xf32>
    tpu.vector_store %arg6[%c0_101, %c192_102], %324 {strides = array<i32>} : memref<1x256xf32, #tpu.memory_space<vmem>>, vector<1x16xf32>,
    %326 = vector.extract_strided_slice %299 {offsets = [13, 0], sizes = [1, 16], strides = [1, 1]} : vector<16x16xf32> to vector<1x16xf32>
    %c0_103 = arith.constant 0 : index
    %c208_104 = arith.constant 208 : index
    %327 = vector.load %arg6[%c0_103, %c208_104] : memref<1x256xf32, #tpu.memory_space<vmem>>, vector<1x16xf32>
    tpu.vector_store %arg6[%c0_103, %c208_104], %326 {strides = array<i32>} : memref<1x256xf32, #tpu.memory_space<vmem>>, vector<1x16xf32>,
    %328 = vector.extract_strided_slice %299 {offsets = [14, 0], sizes = [1, 16], strides = [1, 1]} : vector<16x16xf32> to vector<1x16xf32>
    %c0_105 = arith.constant 0 : index
    %c224_106 = arith.constant 224 : index
    %329 = vector.load %arg6[%c0_105, %c224_106] : memref<1x256xf32, #tpu.memory_space<vmem>>, vector<1x16xf32>
    tpu.vector_store %arg6[%c0_105, %c224_106], %328 {strides = array<i32>} : memref<1x256xf32, #tpu.memory_space<vmem>>, vector<1x16xf32>,
    %330 = vector.extract_strided_slice %299 {offsets = [15, 0], sizes = [1, 16], strides = [1, 1]} : vector<16x16xf32> to vector<1x16xf32>
    %c0_107 = arith.constant 0 : index
    %c240_108 = arith.constant 240 : index
    %331 = vector.load %arg6[%c0_107, %c240_108] : memref<1x256xf32, #tpu.memory_space<vmem>>, vector<1x16xf32>
    tpu.vector_store %arg6[%c0_107, %c240_108], %330 {strides = array<i32>} : memref<1x256xf32, #tpu.memory_space<vmem>>, vector<1x16xf32>,
    %c0_109 = arith.constant 0 : index
    %c0_110 = arith.constant 0 : index
    %c0_111 = arith.constant 0 : index
    %332 = vector.load %arg1[%c0_109, %c0_110, %c0_111] : memref<1x4x256xf32, #tpu.memory_space<vmem>>, vector<1x4x256xf32>
    %333 = vector.shape_cast %332 : vector<1x4x256xf32> to vector<4x256xf32>
    %c0_112 = arith.constant 0 : index
    %c0_113 = arith.constant 0 : index
    %334 = vector.load %arg6[%c0_112, %c0_113] : memref<1x256xf32, #tpu.memory_space<vmem>>, vector<1x256xf32>
    %335 = vector.broadcast %334 : vector<1x256xf32> to vector<4x256xf32>
    %336 = arith.mulf %333, %335 : vector<4x256xf32>
    %c0_114 = arith.constant 0 : index
    %c0_115 = arith.constant 0 : index
    %c0_116 = arith.constant 0 : index
    %337 = vector.load %arg4[%c0_114, %c0_115, %c0_116] : memref<1x4x256xf32, #tpu.memory_space<vmem>>, vector<1x4x256xf32>
    %338 = vector.shape_cast %337 : vector<1x4x256xf32> to vector<4x256xf32>
    %339 = vector.shape_cast %336 : vector<4x256xf32> to vector<1x4x256xf32>
    tpu.vector_store %arg4[%c0_114, %c0_115, %c0_116], %339 {strides = array<i32>} : memref<1x4x256xf32, #tpu.memory_space<vmem>>, vector<1x4x256xf32>,
    return
  }
  func.func @transform_0(%arg0: i32) -> (i32, i32, i32) {
    %c0_i32 = arith.constant 0 : i32
    %c0_i32_0 = arith.constant 0 : i32
    %c0_i32_1 = arith.constant 0 : i32
    return %arg0, %c0_i32, %c0_i32_0 : i32, i32, i32
  }
  func.func @transform_1(%arg0: i32) -> i32 {
    %c0_i32 = arith.constant 0 : i32
    %c0_i32_0 = arith.constant 0 : i32
    return %c0_i32 : i32
  }
  func.func @transform_2(%arg0: i32) -> i32 {
    %c0_i32 = arith.constant 0 : i32
    %c0_i32_0 = arith.constant 0 : i32
    return %c0_i32 : i32
  }
  func.func @transform_3(%arg0: i32) -> (i32, i32, i32) {
    %c0_i32 = arith.constant 0 : i32
    %c0_i32_0 = arith.constant 0 : i32
    %c0_i32_1 = arith.constant 0 : i32
    return %arg0, %c0_i32, %c0_i32_0 : i32, i32, i32
  }
}

</mosaic_0001>

<llo_original>
// kernel: tpu_custom_call.1
$region0: #{tpu_custom_call.1}
  #allocation0 [shape = 'u32[]', space=smem, size = 0x4, offset = 0x4, fixed_abs, tag = 'smem constant byte address 0x4 - core index']
  #allocation1 [shape = 'u32[144,128]{1,0:T(1,128)}', space=vmem, size = 0x12000, scoped, tag = 'internal scratch']
  #allocation2 [shape = 'f32[22,22]{1,0:T(8,128)}', space=vmem, size = 0x3000, scoped, tag = 'scratch operand']
  #allocation3 [shape = 'f32[1,256]{1,0:T(1,128)}', space=vmem, size = 0x400, scoped, tag = 'scratch operand']
  #allocation4 [shape = 'f32[1]{0:T(128)S(6)}', space=smem, size = 0x200, scoped, tag = 'scoped memory for tpu_custom_call.1']
  %s0 = inlined_call_operand.hbm [shape: f32[2,4,256], index: 0, kind: input, shape index: {}]
  %s1 = inlined_call_operand.hbm [shape: f32[49], index: 1, kind: input, shape index: {}]
  %s2 = inlined_call_operand.<no memory space> [shape: f32[1], index: 2, kind: input, shape index: {}]
  %s3 = inlined_call_operand.hbm [shape: f32[2,4,256], index: 3, kind: output, shape index: {}]
  %s4 = sld [smem:[#allocation0]]
  $region53: #{tpu_custom_call.1} parent=0
    _
  %s6 = ssub.s32 1, %s4
  %s7 = scalar_select 0, %s6, %s4
  %8 = sst [smem:[#allocation4]] %s2
  $region1: #{tpu_custom_call.1} parent=0
    #allocation5 [shape = 'u8[8192]{0}', space=vmem, size = 0x2000, scoped, tag = 'input window, operand 0']
    #allocation6 [shape = 's32[2]{0}', space=sflag, size = 0x8, scoped, tag = 'scoped memory for tpu_custom_call.1']
    #allocation7 [shape = 's32[2]{0}', space=sflag, size = 0x8, scoped, tag = 'scoped memory for tpu_custom_call.1']
    #allocation8 [shape = 's32[2]{0}', space=sflag, size = 0x8, scoped, tag = 'scoped memory for tpu_custom_call.1']
    #allocation9 [shape = 'u8[512]{0}', space=smem, size = 0x200, scoped, tag = 'input window, operand 1, single buffered']
    #allocation10 [shape = 'u8[8192]{0}', space=vmem, size = 0x2000, scoped, tag = 'output window, operand 0']
    %9 = vsyncpa [#allocation6], 0
    %s10 = scalar_lea.sflag [#allocation6], 1
    %11 = vsyncpa %s10, 0
    %12 = vsyncpa [#allocation8], 0
    %13 = vsyncpa [#allocation7], 0
    %s14 = scalar_lea.sflag [#allocation7], 1
    %15 = vsyncpa %s14, 0
    loop: start=0, step=1, limit=4
    $region2: #{tpu_custom_call.1} parent=1 // loop_pre_header
      _
    $region3: #{tpu_custom_call.1} parent=1 // loop_header
      %s17 = sphi 0, %s21
      %p18 = scmp.ge.s32.totalorder %s17, 4
      %s27 = sphi 0, %s29
      %s30 = sphi 0, %s27
      %s31 = sphi 0, %s30
      %s47 = sphi 0, %s31
      %s51 = sphi 0, %s51
      %s53 = sphi 0, %s51
      %s54 = sphi 0, %s53
      %s68 = sphi 0, %s54
      %s72 = sphi 0, %s72
      %s74 = sphi 0, %s72
      %s75 = sphi 0, %s74
      %s89 = sphi 0, %s75
      %s95 = sphi 0, %s97
      %s98 = sphi 0, %s95
      %s99 = sphi 0, %s98
      %s115 = sphi 0, %s99
    $region4: #{tpu_custom_call.1} parent=1 // loop_header_branch
      %20 = sbr.rel (%p18) target = $region8
    $region5: #{tpu_custom_call.1} parent=1 // loop_body
      %s22 = ssub.s32 %s17, 1
      %s23 = ssub.s32 %s17, 2
      %s24 = sadd.s32 %s17, 1
      %s25 = ssub.s32 %s17, %s24
      %p26 = scmp.eq.s32.totalorder %s25, 0
      %s28 = sadd.s32 %s27, 1
      %s29 = scalar_select %p26, %s27, %s28
      %p32 = pneg %p26
      %p33 = scmp.eq.s32.totalorder %s17, 1
      %p34 = por %p32, %p33
      %p35 = scmp.ne.s32.totalorder %s27, %s30
      %p36 = scmp.eq.s32.totalorder %s17, 0
      %p37 = por %p35, %p36
      %p38 = scmp.ne.s32.totalorder %s27, %s30
      %p39 = scmp.eq.s32.totalorder %s22, 1
      %p40 = por %p38, %p39
      %p41 = scmp.ne.s32.totalorder %s30, %s31
      %p42 = scmp.eq.s32.totalorder %s22, 0
      %p43 = por %p41, %p42
      %p44 = scmp.ne.s32.totalorder %s30, %s31
      %p45 = scmp.eq.s32.totalorder %s23, 1
      %p46 = por %p44, %p45
      %p48 = scmp.ne.s32.totalorder %s31, %s47
      %p49 = scmp.eq.s32.totalorder %s23, 0
      %p50 = por %p48, %p49
      %s52 = sadd.s32 %s51, 1
      %p55 = scmp.eq.s32.totalorder %s17, 1
      %p56 = scmp.ne.s32.totalorder %s51, %s53
      %p57 = scmp.eq.s32.totalorder %s17, 0
      %p58 = por %p56, %p57
      %p59 = scmp.ne.s32.totalorder %s51, %s53
      %p60 = scmp.eq.s32.totalorder %s22, 1
      %p61 = por %p59, %p60
      %p62 = scmp.ne.s32.totalorder %s53, %s54
      %p63 = scmp.eq.s32.totalorder %s22, 0
      %p64 = por %p62, %p63
      %p65 = scmp.ne.s32.totalorder %s53, %s54
      %p66 = scmp.eq.s32.totalorder %s23, 1
      %p67 = por %p65, %p66
      %p69 = scmp.ne.s32.totalorder %s54, %s68
      %p70 = scmp.eq.s32.totalorder %s23, 0
      %p71 = por %p69, %p70
      %s73 = sadd.s32 %s72, 1
      %p76 = scmp.eq.s32.totalorder %s17, 1
      %p77 = scmp.ne.s32.totalorder %s72, %s74
      %p78 = scmp.eq.s32.totalorder %s17, 0
      %p79 = por %p77, %p78
      %p80 = scmp.ne.s32.totalorder %s72, %s74
      %p81 = scmp.eq.s32.totalorder %s22, 1
      %p82 = por %p80, %p81
      %p83 = scmp.ne.s32.totalorder %s74, %s75
      %p84 = scmp.eq.s32.totalorder %s22, 0
      %p85 = por %p83, %p84
      %p86 = scmp.ne.s32.totalorder %s74, %s75
      %p87 = scmp.eq.s32.totalorder %s23, 1
      %p88 = por %p86, %p87
      %p90 = scmp.ne.s32.totalorder %s75, %s89
      %p91 = scmp.eq.s32.totalorder %s23, 0
      %p92 = por %p90, %p91
      %s93 = ssub.s32 %s17, %s24
      %p94 = scmp.eq.s32.totalorder %s93, 0
      %s96 = sadd.s32 %s95, 1
      %s97 = scalar_select %p94, %s95, %s96
      %p100 = pneg %p94
      %p101 = scmp.eq.s32.totalorder %s17, 1
      %p102 = por %p100, %p101
      %p103 = scmp.ne.s32.totalorder %s95, %s98
      %p104 = scmp.eq.s32.totalorder %s17, 0
      %p105 = por %p103, %p104
      %p106 = scmp.ne.s32.totalorder %s95, %s98
      %p107 = scmp.eq.s32.totalorder %s22, 1
      %p108 = por %p106, %p107
      %p109 = scmp.ne.s32.totalorder %s98, %s99
      %p110 = scmp.eq.s32.totalorder %s22, 0
      %p111 = por %p109, %p110
      %p112 = scmp.ne.s32.totalorder %s98, %s99
      %p113 = scmp.eq.s32.totalorder %s23, 1
      %p114 = por %p112, %p113
      %p116 = scmp.ne.s32.totalorder %s99, %s115
      %p117 = scmp.eq.s32.totalorder %s23, 0
      %p118 = por %p116, %p117
      %p119 = scmp.le.s32.totalorder 1, %s17
      %p120 = scmp.lt.s32.totalorder %s17, 3
      %p121 = pnand %p119, %p120
      %p122 = pneg %p121
      // Predicated region
      $region9: #{tpu_custom_call.1} parent=5 // pred_check
        _
      $region10: #{tpu_custom_call.1} parent=5 // pred_check_branch
        %124 = sbr.rel (%p121) target = $region12
      $region11: #{tpu_custom_call.1} parent=5 // pred_region
        %s125 = ssub.s32 %s17, 1
        // Predicated region
        $region13: #{tpu_custom_call.1} parent=11 // pred_check
          %p126 = pneg %p64
        $region14: #{tpu_custom_call.1} parent=11 // pred_check_branch
          %128 = sbr.rel (%p126) target = $region16
        $region15: #{tpu_custom_call.1} parent=11 // pred_region
          %s130 = ssub.s32 16, 16
          %131 = vsyncadd [#allocation8], %s130
          %134 = dma.hbm_to_smem %s1, 16, [#allocation9], [#allocation8]
        $region16: #{tpu_custom_call.1} parent=11 // pred_fallthru
          _
        // Predicated region
        $region17: #{tpu_custom_call.1} parent=11 // pred_check
          %p135 = pneg %p85
        $region18: #{tpu_custom_call.1} parent=11 // pred_check_branch
          %137 = sbr.rel (%p135) target = $region20
        $region19: #{tpu_custom_call.1} parent=11 // pred_region
          _
        $region20: #{tpu_custom_call.1} parent=11 // pred_fallthru
          _
      $region12: #{tpu_custom_call.1} parent=5 // pred_fallthru
        _
      %p138 = scmp.lt.s32.totalorder %s17, 2
      // Predicated region
      $region21: #{tpu_custom_call.1} parent=5 // pred_check
        %p139 = pneg %p138
      $region22: #{tpu_custom_call.1} parent=5 // pred_check_branch
        %141 = sbr.rel (%p139) target = $region24
      $region23: #{tpu_custom_call.1} parent=5 // pred_region
        // Predicated region
        $region25: #{tpu_custom_call.1} parent=23 // pred_check
          %p142 = pneg %p37
        $region26: #{tpu_custom_call.1} parent=23 // pred_check_branch
          %144 = sbr.rel (%p142) target = $region28
        $region27: #{tpu_custom_call.1} parent=23 // pred_region
          %s145 = sand.u32 %s27, 1
          %s146 = scalar_lea.sflag [#allocation6], %s145
          %s147 = sand.u32 %s27, 1
          %s148 = smul.addr %s147, 8
          %s149 = scalar_lea.vmem [#allocation5], %s148
          %s151 = ssub.s32 128, 128
          %152 = vsyncadd %s146, %s151
          %s153 = smul.addr %s17, 2
          %s154 = smul.addr %s153, 64
          %s155 = scalar_lea.hbm %s0, %s154
          %s157 = sshll.u32 %s149, 4
          %s158 = int_to_ptr.vmem [resolvable:$true] %s157
          %160 = dma.hbm_to_vmem [thread:$0]  %s155, 128, %s158, %s146
        $region28: #{tpu_custom_call.1} parent=23 // pred_fallthru
          _
      $region24: #{tpu_custom_call.1} parent=5 // pred_fallthru
        _
      %p161 = scmp.le.s32.totalorder 1, %s17
      %p162 = scmp.lt.s32.totalorder %s17, 3
      %p163 = pnand %p161, %p162
      %p164 = pneg %p163
      // Predicated region
      $region29: #{tpu_custom_call.1} parent=5 // pred_check
        _
      $region30: #{tpu_custom_call.1} parent=5 // pred_check_branch
        %166 = sbr.rel (%p163) target = $region32
      $region31: #{tpu_custom_call.1} parent=5 // pred_region
        %s167 = ssub.s32 %s17, 1
        %s168 = sand.u32 %s30, 1
        %s169 = scalar_lea.sflag [#allocation6], %s168
        %s170 = sand.u32 %s30, 1
        %s171 = smul.addr %s170, 8
        %s172 = scalar_lea.vmem [#allocation5], %s171
        // Predicated region
        $region33: #{tpu_custom_call.1} parent=31 // pred_check
          %p173 = pneg %p43
        $region34: #{tpu_custom_call.1} parent=31 // pred_check_branch
          %175 = sbr.rel (%p173) target = $region36
        $region35: #{tpu_custom_call.1} parent=31 // pred_region
          %176 = dma.done %s169, 128
        $region36: #{tpu_custom_call.1} parent=31 // pred_fallthru
          _
        // Predicated region
        $region37: #{tpu_custom_call.1} parent=31 // pred_check
          %p177 = pneg %p64
        $region38: #{tpu_custom_call.1} parent=31 // pred_check_branch
          %179 = sbr.rel (%p177) target = $region40
        $region39: #{tpu_custom_call.1} parent=31 // pred_region
          %180 = dma.done [#allocation8], 16
        $region40: #{tpu_custom_call.1} parent=31 // pred_fallthru
          _
        %181 = sfence
        %s182 = sand.u32 %s30, 1
        %s183 = scalar_lea.sflag [#allocation6], %s182
        %s184 = sand.u32 %s30, 1
        %s185 = smul.addr %s184, 8
        %s186 = scalar_lea.vmem [#allocation5], %s185
        %p187 = pneg %p43
        %p188 = pneg %p40
        %p189 = pneg %p64
        %p190 = pneg %p61
        %p191 = pneg %p85
        %p192 = pneg %p82
        %p193 = pneg %p111
        %p194 = pneg %p108
        %s195 = sand.u32 %s98, 1
        %s196 = scalar_lea.sflag [#allocation7], %s195
        %s197 = sand.u32 %s98, 1
        %s198 = smul.addr %s197, 8
        %s199 = scalar_lea.vmem [#allocation10], %s198
        %v200 = vld [vmem:[%s172] sm:$0xff]
        %v202 = vcombine.high %v200, %v200
        %vm204 = vcmask 1043456
        %v205 = vsel %vm204, %v200, 0.0
        %v206 = vrot.slane %v205, 4
        %v207 = vadd.f32 %v205, %v206
        %v208 = vrot.slane %v207, 2
        %v209 = vadd.f32 %v207, %v208
        %v210 = vrot.slane %v209, 1
        %v211 = vadd.f32 %v209, %v210
        %v212 = vsel %vm204, %v202, 0.0
        %v213 = vrot.slane %v212, 4
        %v214 = vadd.f32 %v212, %v213
        %v215 = vrot.slane %v214, 2
        %v216 = vadd.f32 %v214, %v215
        %v217 = vrot.slane %v216, 1
        %v218 = vadd.f32 %v216, %v217
        %v221 = vcombine.low %v211, %v218
        %v223 = vunpack.c.l.s4 1966171168
        %v224 = vunpack.c.0.s8 %v223
        %v225 = vlaneseq
        %v226 = vshrl.u32 %v225, 7
        %v227 = vsub.s32 %v224, %v226
        %v228 = vrot.slane %v221, %v227
        %v230 = vunpack.c.l.s4 1966171168
        %v231 = vunpack.c.0.s8 %v230
        %v232 = vlaneseq
        %v233 = vshrl.u32 %v232, 7
        %v234 = vsub.s32 %v231, %v233
        %v235 = vrot.slane %v228, %v234
        %v237 = vlaneseq
        %vm238 = vcmp.ge.s32.totalorder %v237, 0
        %vm239 = vcmp.lt.s32.totalorder %v237, 256
        %vm240 = vmand %vm238, %vm239
        %241 = vst.msk [vmem:[#allocation3] sm:$0x3] %vm240, %v235
        %vm242 = vcmask 179200
        %243 = vst.msk [vmem:[#allocation2] sm:$0xff] %vm242, 0.0
        %244 = vst.msk [vmem:[#allocation2 + $0x8] sm:$0xff] %vm242, 0.0
        %vm245 = vcmask 177152
        %246 = vst.msk [vmem:[#allocation2 + $0x10] sm:$0x3f] %vm245, 0.0
        %v247 = vld [vmem:[#allocation3] sm:$0x1]
        %v249 = vlaneseq
        %v250 = vshrl.u32 %v249, 7
        %v251 = vsub.s32 0, %v250
        %v252 = vrot.slane %v247, %v251
        %253 = vrot.lane.b32.xlu0 %v252, 3
        %v254 = vpop.permute.xlu0 %253
        %vm256 = vcmask 147480
        %257 = vst.msk [vmem:[#allocation2 + $0x3] sm:$0x1] %vm256, %v254
        %v258 = vld [vmem:[#allocation3] sm:$0x1]
        %v260 = vlaneseq
        %v261 = vshrl.u32 %v260, 7
        %v262 = vsub.s32 0, %v261
        %v263 = vrot.slane %v258, %v262
        %264 = vrot.lane.b32.xlu0 %v263, 115
        %v265 = vpop.permute.xlu0 %264
        %267 = vst.msk [vmem:[#allocation2 + $0x4] sm:$0x1] %vm256, %v265
        %v268 = vld [vmem:[#allocation3] sm:$0x1]
        %v270 = vlaneseq
        %v271 = vshrl.u32 %v270, 7
        %v272 = vsub.s32 0, %v271
        %v273 = vrot.slane %v268, %v272
        %274 = vrot.lane.b32.xlu0 %v273, 99
        %v275 = vpop.permute.xlu0 %274
        %277 = vst.msk [vmem:[#allocation2 + $0x5] sm:$0x1] %vm256, %v275
        %v278 = vld [vmem:[#allocation3] sm:$0x1]
        %v280 = vlaneseq
        %v281 = vshrl.u32 %v280, 7
        %v282 = vsub.s32 0, %v281
        %v283 = vrot.slane %v278, %v282
        %284 = vrot.lane.b32.xlu0 %v283, 83
        %v285 = vpop.permute.xlu0 %284
        %287 = vst.msk [vmem:[#allocation2 + $0x6] sm:$0x1] %vm256, %v285
        %v288 = vld [vmem:[#allocation3] sm:$0x1]
        %v290 = vlaneseq
        %v291 = vshrl.u32 %v290, 7
        %v292 = vsub.s32 0, %v291
        %v293 = vrot.slane %v288, %v292
        %294 = vrot.lane.b32.xlu0 %v293, 67
        %v295 = vpop.permute.xlu0 %294
        %297 = vst.msk [vmem:[#allocation2 + $0x7] sm:$0x1] %vm256, %v295
        %v298 = vld [vmem:[#allocation3] sm:$0x1]
        %v300 = vlaneseq
        %v301 = vshrl.u32 %v300, 7
        %v302 = vsub.s32 0, %v301
        %v303 = vrot.slane %v298, %v302
        %304 = vrot.lane.b32.xlu0 %v303, 51
        %v305 = vpop.permute.xlu0 %304
        %307 = vst.msk [vmem:[#allocation2 + $0x8] sm:$0x1] %vm256, %v305
        %v308 = vld [vmem:[#allocation3] sm:$0x1]
        %v310 = vlaneseq
        %v311 = vshrl.u32 %v310, 7
        %v312 = vsub.s32 0, %v311
        %v313 = vrot.slane %v308, %v312
        %314 = vrot.lane.b32.xlu0 %v313, 35
        %v315 = vpop.permute.xlu0 %314
        %317 = vst.msk [vmem:[#allocation2 + $0x9] sm:$0x1] %vm256, %v315
        %v318 = vld [vmem:[#allocation3] sm:$0x1]
        %v320 = vlaneseq
        %v321 = vshrl.u32 %v320, 7
        %v322 = vsub.s32 0, %v321
        %v323 = vrot.slane %v318, %v322
        %324 = vrot.lane.b32.xlu0 %v323, 19
        %v325 = vpop.permute.xlu0 %324
        %327 = vst.msk [vmem:[#allocation2 + $0xa] sm:$0x1] %vm256, %v325
        %v328 = vld [vmem:[#allocation3 + $0x1] sm:$0x1]
        %v330 = vlaneseq
        %v331 = vshrl.u32 %v330, 7
        %v332 = vsub.s32 0, %v331
        %v333 = vrot.slane %v328, %v332
        %334 = vrot.lane.b32.xlu0 %v333, 3
        %v335 = vpop.permute.xlu0 %334
        %337 = vst.msk [vmem:[#allocation2 + $0xb] sm:$0x1] %vm256, %v335
        %v338 = vld [vmem:[#allocation3 + $0x1] sm:$0x1]
        %v340 = vlaneseq
        %v341 = vshrl.u32 %v340, 7
        %v342 = vsub.s32 0, %v341
        %v343 = vrot.slane %v338, %v342
        %344 = vrot.lane.b32.xlu0 %v343, 115
        %v345 = vpop.permute.xlu0 %344
        %347 = vst.msk [vmem:[#allocation2 + $0xc] sm:$0x1] %vm256, %v345
        %v348 = vld [vmem:[#allocation3 + $0x1] sm:$0x1]
        %v350 = vlaneseq
        %v351 = vshrl.u32 %v350, 7
        %v352 = vsub.s32 0, %v351
        %v353 = vrot.slane %v348, %v352
        %354 = vrot.lane.b32.xlu0 %v353, 99
        %v355 = vpop.permute.xlu0 %354
        %357 = vst.msk [vmem:[#allocation2 + $0xd] sm:$0x1] %vm256, %v355
        %v358 = vld [vmem:[#allocation3 + $0x1] sm:$0x1]
        %v360 = vlaneseq
        %v361 = vshrl.u32 %v360, 7
        %v362 = vsub.s32 0, %v361
        %v363 = vrot.slane %v358, %v362
        %364 = vrot.lane.b32.xlu0 %v363, 83
        %v365 = vpop.permute.xlu0 %364
        %367 = vst.msk [vmem:[#allocation2 + $0xe] sm:$0x1] %vm256, %v365
        %v368 = vld [vmem:[#allocation3 + $0x1] sm:$0x1]
        %v370 = vlaneseq
        %v371 = vshrl.u32 %v370, 7
        %v372 = vsub.s32 0, %v371
        %v373 = vrot.slane %v368, %v372
        %374 = vrot.lane.b32.xlu0 %v373, 67
        %v375 = vpop.permute.xlu0 %374
        %377 = vst.msk [vmem:[#allocation2 + $0xf] sm:$0x1] %vm256, %v375
        %v378 = vld [vmem:[#allocation3 + $0x1] sm:$0x1]
        %v380 = vlaneseq
        %v381 = vshrl.u32 %v380, 7
        %v382 = vsub.s32 0, %v381
        %v383 = vrot.slane %v378, %v382
        %384 = vrot.lane.b32.xlu0 %v383, 51
        %v385 = vpop.permute.xlu0 %384
        %387 = vst.msk [vmem:[#allocation2 + $0x10] sm:$0x1] %vm256, %v385
        %v388 = vld [vmem:[#allocation3 + $0x1] sm:$0x1]
        %v390 = vlaneseq
        %v391 = vshrl.u32 %v390, 7
        %v392 = vsub.s32 0, %v391
        %v393 = vrot.slane %v388, %v392
        %394 = vrot.lane.b32.xlu0 %v393, 35
        %v395 = vpop.permute.xlu0 %394
        %397 = vst.msk [vmem:[#allocation2 + $0x11] sm:$0x1] %vm256, %v395
        %v398 = vld [vmem:[#allocation3 + $0x1] sm:$0x1]
        %v400 = vlaneseq
        %v401 = vshrl.u32 %v400, 7
        %v402 = vsub.s32 0, %v401
        %v403 = vrot.slane %v398, %v402
        %404 = vrot.lane.b32.xlu0 %v403, 19
        %v405 = vpop.permute.xlu0 %404
        %407 = vst.msk [vmem:[#allocation2 + $0x12] sm:$0x1] %vm256, %v405
        %v408 = vld [vmem:[#allocation2] sm:$0xff]
        %v409 = vld [vmem:[#allocation2 + $0x8] sm:$0xff]
        %v410 = vld [vmem:[#allocation2 + $0x10] sm:$0x3f]
        %s411 = sld [smem:[#allocation9]]
        %v412 = vstv %s411
        %v413 = vmul.f32 %v412, %v408
        %v414 = vmul.f32 %v412, %v409
        %v415 = vadd.f32 %v413, 0.0
        %v416 = vadd.f32 %v414, 0.0
        %s417 = sld [smem:[#allocation9 + $0x7]]
        %v418 = vstv %s417
        %v419 = vmul.f32 %v418, %v408
        %v420 = vmul.f32 %v418, %v409
        %v421 = vmul.f32 %v418, %v410
        %vm425 = vcmask 1046528
        %v426 = vrot.slane %v419, 1
        %v427 = vrot.slane %v420, 1
        %v428 = vsel %vm425, %v426, %v427
        %v429 = vrot.slane %v421, 1
        %v430 = vsel %vm425, %v427, %v429
        %v433 = vadd.f32 %v415, %v428
        %v434 = vadd.f32 %v416, %v430
        %s435 = sld [smem:[#allocation9 + $0xe]]
        %v436 = vstv %s435
        %v437 = vmul.f32 %v436, %v408
        %v438 = vmul.f32 %v436, %v409
        %v439 = vmul.f32 %v436, %v410
        %vm443 = vcmask 1045504
        %v444 = vrot.slane %v437, 2
        %v445 = vrot.slane %v438, 2
        %v446 = vsel %vm443, %v444, %v445
        %v447 = vrot.slane %v439, 2
        %v448 = vsel %vm443, %v445, %v447
        %v451 = vadd.f32 %v433, %v446
        %v452 = vadd.f32 %v434, %v448
        %s453 = sld [smem:[#allocation9 + $0x15]]
        %v454 = vstv %s453
        %v455 = vmul.f32 %v454, %v408
        %v456 = vmul.f32 %v454, %v409
        %v457 = vmul.f32 %v454, %v410
        %vm461 = vcmask 1044480
        %v462 = vrot.slane %v455, 3
        %v463 = vrot.slane %v456, 3
        %v464 = vsel %vm461, %v462, %v463
        %v465 = vrot.slane %v457, 3
        %v466 = vsel %vm461, %v463, %v465
        %v469 = vadd.f32 %v451, %v464
        %v470 = vadd.f32 %v452, %v466
        %s471 = sld [smem:[#allocation9 + $0x1c]]
        %v472 = vstv %s471
        %v473 = vmul.f32 %v472, %v408
        %v474 = vmul.f32 %v472, %v409
        %v475 = vmul.f32 %v472, %v410
        %v479 = vrot.slane %v473, 4
        %v480 = vrot.slane %v474, 4
        %v481 = vsel %vm204, %v479, %v480
        %v482 = vrot.slane %v475, 4
        %v483 = vsel %vm204, %v480, %v482
        %v486 = vadd.f32 %v469, %v481
        %v487 = vadd.f32 %v470, %v483
        %s488 = sld [smem:[#allocation9 + $0x23]]
        %v489 = vstv %s488
        %v490 = vmul.f32 %v489, %v408
        %v491 = vmul.f32 %v489, %v409
        %v492 = vmul.f32 %v489, %v410
        %vm496 = vcmask 1042432
        %v497 = vrot.slane %v490, 5
        %v498 = vrot.slane %v491, 5
        %v499 = vsel %vm496, %v497, %v498
        %v500 = vrot.slane %v492, 5
        %v501 = vsel %vm496, %v498, %v500
        %v504 = vadd.f32 %v486, %v499
        %v505 = vadd.f32 %v487, %v501
        %s506 = sld [smem:[#allocation9 + $0x2a]]
        %v507 = vstv %s506
        %v508 = vmul.f32 %v507, %v408
        %v509 = vmul.f32 %v507, %v409
        %v510 = vmul.f32 %v507, %v410
        %vm514 = vcmask 1041408
        %v515 = vrot.slane %v508, 6
        %v516 = vrot.slane %v509, 6
        %v517 = vsel %vm514, %v515, %v516
        %v518 = vrot.slane %v510, 6
        %v519 = vsel %vm514, %v516, %v518
        %v522 = vadd.f32 %v504, %v517
        %v523 = vadd.f32 %v505, %v519
        %s524 = sld [smem:[#allocation9 + $0x1]]
        %v525 = vstv %s524
        %v526 = vmul.f32 %v525, %v408
        %v527 = vmul.f32 %v525, %v409
        %530 = vrot.lane.b32.xlu0 %v526, 127
        %v531 = vpop.permute.xlu0 %530
        %532 = vrot.lane.b32.xlu0 %v527, 127
        %v533 = vpop.permute.xlu0 %532
        %v536 = vadd.f32 %v522, %v531
        %v537 = vadd.f32 %v523, %v533
        %s538 = sld [smem:[#allocation9 + $0x8]]
        %v539 = vstv %s538
        %v540 = vmul.f32 %v539, %v408
        %v541 = vmul.f32 %v539, %v409
        %v542 = vmul.f32 %v539, %v410
        %v546 = vrot.slane %v540, 1
        %v547 = vrot.slane %v541, 1
        %v548 = vsel %vm425, %v546, %v547
        %v549 = vrot.slane %v542, 1
        %v550 = vsel %vm425, %v547, %v549
        %551 = vrot.lane.b32.xlu0 %v548, 127
        %v552 = vpop.permute.xlu0 %551
        %553 = vrot.lane.b32.xlu0 %v550, 127
        %v554 = vpop.permute.xlu0 %553
        %v557 = vadd.f32 %v536, %v552
        %v558 = vadd.f32 %v537, %v554
        %s559 = sld [smem:[#allocation9 + $0xf]]
        %v560 = vstv %s559
        %v561 = vmul.f32 %v560, %v408
        %v562 = vmul.f32 %v560, %v409
        %v563 = vmul.f32 %v560, %v410
        %v567 = vrot.slane %v561, 2
        %v568 = vrot.slane %v562, 2
        %v569 = vsel %vm443, %v567, %v568
        %v570 = vrot.slane %v563, 2
        %v571 = vsel %vm443, %v568, %v570
        %572 = vrot.lane.b32.xlu0 %v569, 127
        %v573 = vpop.permute.xlu0 %572
        %574 = vrot.lane.b32.xlu0 %v571, 127
        %v575 = vpop.permute.xlu0 %574
        %v578 = vadd.f32 %v557, %v573
        %v579 = vadd.f32 %v558, %v575
        %s580 = sld [smem:[#allocation9 + $0x16]]
        %v581 = vstv %s580
        %v582 = vmul.f32 %v581, %v408
        %v583 = vmul.f32 %v581, %v409
        %v584 = vmul.f32 %v581, %v410
        %v588 = vrot.slane %v582, 3
        %v589 = vrot.slane %v583, 3
        %v590 = vsel %vm461, %v588, %v589
        %v591 = vrot.slane %v584, 3
        %v592 = vsel %vm461, %v589, %v591
        %593 = vrot.lane.b32.xlu0 %v590, 127
        %v594 = vpop.permute.xlu0 %593
        %595 = vrot.lane.b32.xlu0 %v592, 127
        %v596 = vpop.permute.xlu0 %595
        %v599 = vadd.f32 %v578, %v594
        %v600 = vadd.f32 %v579, %v596
        %s601 = sld [smem:[#allocation9 + $0x1d]]
        %v602 = vstv %s601
        %v603 = vmul.f32 %v602, %v408
        %v604 = vmul.f32 %v602, %v409
        %v605 = vmul.f32 %v602, %v410
        %v609 = vrot.slane %v603, 4
        %v610 = vrot.slane %v604, 4
        %v611 = vsel %vm204, %v609, %v610
        %v612 = vrot.slane %v605, 4
        %v613 = vsel %vm204, %v610, %v612
        %614 = vrot.lane.b32.xlu0 %v611, 127
        %v615 = vpop.permute.xlu0 %614
        %616 = vrot.lane.b32.xlu0 %v613, 127
        %v617 = vpop.permute.xlu0 %616
        %v620 = vadd.f32 %v599, %v615
        %v621 = vadd.f32 %v600, %v617
        %s622 = sld [smem:[#allocation9 + $0x24]]
        %v623 = vstv %s622
        %v624 = vmul.f32 %v623, %v408
        %v625 = vmul.f32 %v623, %v409
        %v626 = vmul.f32 %v623, %v410
        %v630 = vrot.slane %v624, 5
        %v631 = vrot.slane %v625, 5
        %v632 = vsel %vm496, %v630, %v631
        %v633 = vrot.slane %v626, 5
        %v634 = vsel %vm496, %v631, %v633
        %635 = vrot.lane.b32.xlu0 %v632, 127
        %v636 = vpop.permute.xlu0 %635
        %637 = vrot.lane.b32.xlu0 %v634, 127
        %v638 = vpop.permute.xlu0 %637
        %v641 = vadd.f32 %v620, %v636
        %v642 = vadd.f32 %v621, %v638
        %s643 = sld [smem:[#allocation9 + $0x2b]]
        %v644 = vstv %s643
        %v645 = vmul.f32 %v644, %v408
        %v646 = vmul.f32 %v644, %v409
        %v647 = vmul.f32 %v644, %v410
        %v651 = vrot.slane %v645, 6
        %v652 = vrot.slane %v646, 6
        %v653 = vsel %vm514, %v651, %v652
        %v654 = vrot.slane %v647, 6
        %v655 = vsel %vm514, %v652, %v654
        %656 = vrot.lane.b32.xlu0 %v653, 127
        %v657 = vpop.permute.xlu0 %656
        %658 = vrot.lane.b32.xlu0 %v655, 127
        %v659 = vpop.permute.xlu0 %658
        %v662 = vadd.f32 %v641, %v657
        %v663 = vadd.f32 %v642, %v659
        %s664 = sld [smem:[#allocation9 + $0x2]]
        %v665 = vstv %s664
        %v666 = vmul.f32 %v665, %v408
        %v667 = vmul.f32 %v665, %v409
        %670 = vrot.lane.b32.xlu0 %v666, 126
        %v671 = vpop.permute.xlu0 %670
        %672 = vrot.lane.b32.xlu0 %v667, 126
        %v673 = vpop.permute.xlu0 %672
        %v676 = vadd.f32 %v662, %v671
        %v677 = vadd.f32 %v663, %v673
        %s678 = sld [smem:[#allocation9 + $0x9]]
        %v679 = vstv %s678
        %v680 = vmul.f32 %v679, %v408
        %v681 = vmul.f32 %v679, %v409
        %v682 = vmul.f32 %v679, %v410
        %v686 = vrot.slane %v680, 1
        %v687 = vrot.slane %v681, 1
        %v688 = vsel %vm425, %v686, %v687
        %v689 = vrot.slane %v682, 1
        %v690 = vsel %vm425, %v687, %v689
        %691 = vrot.lane.b32.xlu0 %v688, 126
        %v692 = vpop.permute.xlu0 %691
        %693 = vrot.lane.b32.xlu0 %v690, 126
        %v694 = vpop.permute.xlu0 %693
        %v697 = vadd.f32 %v676, %v692
        %v698 = vadd.f32 %v677, %v694
        %s699 = sld [smem:[#allocation9 + $0x10]]
        %v700 = vstv %s699
        %v701 = vmul.f32 %v700, %v408
        %v702 = vmul.f32 %v700, %v409
        %v703 = vmul.f32 %v700, %v410
        %v707 = vrot.slane %v701, 2
        %v708 = vrot.slane %v702, 2
        %v709 = vsel %vm443, %v707, %v708
        %v710 = vrot.slane %v703, 2
        %v711 = vsel %vm443, %v708, %v710
        %712 = vrot.lane.b32.xlu0 %v709, 126
        %v713 = vpop.permute.xlu0 %712
        %714 = vrot.lane.b32.xlu0 %v711, 126
        %v715 = vpop.permute.xlu0 %714
        %v718 = vadd.f32 %v697, %v713
        %v719 = vadd.f32 %v698, %v715
        %s720 = sld [smem:[#allocation9 + $0x17]]
        %v721 = vstv %s720
        %v722 = vmul.f32 %v721, %v408
        %v723 = vmul.f32 %v721, %v409
        %v724 = vmul.f32 %v721, %v410
        %v728 = vrot.slane %v722, 3
        %v729 = vrot.slane %v723, 3
        %v730 = vsel %vm461, %v728, %v729
        %v731 = vrot.slane %v724, 3
        %v732 = vsel %vm461, %v729, %v731
        %733 = vrot.lane.b32.xlu0 %v730, 126
        %v734 = vpop.permute.xlu0 %733
        %735 = vrot.lane.b32.xlu0 %v732, 126
        %v736 = vpop.permute.xlu0 %735
        %v739 = vadd.f32 %v718, %v734
        %v740 = vadd.f32 %v719, %v736
        %s741 = sld [smem:[#allocation9 + $0x1e]]
        %v742 = vstv %s741
        %v743 = vmul.f32 %v742, %v408
        %v744 = vmul.f32 %v742, %v409
        %v745 = vmul.f32 %v742, %v410
        %v749 = vrot.slane %v743, 4
        %v750 = vrot.slane %v744, 4
        %v751 = vsel %vm204, %v749, %v750
        %v752 = vrot.slane %v745, 4
        %v753 = vsel %vm204, %v750, %v752
        %754 = vrot.lane.b32.xlu0 %v751, 126
        %v755 = vpop.permute.xlu0 %754
        %756 = vrot.lane.b32.xlu0 %v753, 126
        %v757 = vpop.permute.xlu0 %756
        %v760 = vadd.f32 %v739, %v755
        %v761 = vadd.f32 %v740, %v757
        %s762 = sld [smem:[#allocation9 + $0x25]]
        %v763 = vstv %s762
        %v764 = vmul.f32 %v763, %v408
        %v765 = vmul.f32 %v763, %v409
        %v766 = vmul.f32 %v763, %v410
        %v770 = vrot.slane %v764, 5
        %v771 = vrot.slane %v765, 5
        %v772 = vsel %vm496, %v770, %v771
        %v773 = vrot.slane %v766, 5
        %v774 = vsel %vm496, %v771, %v773
        %775 = vrot.lane.b32.xlu0 %v772, 126
        %v776 = vpop.permute.xlu0 %775
        %777 = vrot.lane.b32.xlu0 %v774, 126
        %v778 = vpop.permute.xlu0 %777
        %v781 = vadd.f32 %v760, %v776
        %v782 = vadd.f32 %v761, %v778
        %s783 = sld [smem:[#allocation9 + $0x2c]]
        %v784 = vstv %s783
        %v785 = vmul.f32 %v784, %v408
        %v786 = vmul.f32 %v784, %v409
        %v787 = vmul.f32 %v784, %v410
        %v791 = vrot.slane %v785, 6
        %v792 = vrot.slane %v786, 6
        %v793 = vsel %vm514, %v791, %v792
        %v794 = vrot.slane %v787, 6
        %v795 = vsel %vm514, %v792, %v794
        %796 = vrot.lane.b32.xlu0 %v793, 126
        %v797 = vpop.permute.xlu0 %796
        %798 = vrot.lane.b32.xlu0 %v795, 126
        %v799 = vpop.permute.xlu0 %798
        %v802 = vadd.f32 %v781, %v797
        %v803 = vadd.f32 %v782, %v799
        %s804 = sld [smem:[#allocation9 + $0x3]]
        %v805 = vstv %s804
        %v806 = vmul.f32 %v805, %v408
        %v807 = vmul.f32 %v805, %v409
        %810 = vrot.lane.b32.xlu0 %v806, 125
        %v811 = vpop.permute.xlu0 %810
        %812 = vrot.lane.b32.xlu0 %v807, 125
        %v813 = vpop.permute.xlu0 %812
        %v816 = vadd.f32 %v802, %v811
        %v817 = vadd.f32 %v803, %v813
        %s818 = sld [smem:[#allocation9 + $0xa]]
        %v819 = vstv %s818
        %v820 = vmul.f32 %v819, %v408
        %v821 = vmul.f32 %v819, %v409
        %v822 = vmul.f32 %v819, %v410
        %v826 = vrot.slane %v820, 1
        %v827 = vrot.slane %v821, 1
        %v828 = vsel %vm425, %v826, %v827
        %v829 = vrot.slane %v822, 1
        %v830 = vsel %vm425, %v827, %v829
        %831 = vrot.lane.b32.xlu0 %v828, 125
        %v832 = vpop.permute.xlu0 %831
        %833 = vrot.lane.b32.xlu0 %v830, 125
        %v834 = vpop.permute.xlu0 %833
        %v837 = vadd.f32 %v816, %v832
        %v838 = vadd.f32 %v817, %v834
        %s839 = sld [smem:[#allocation9 + $0x11]]
        %v840 = vstv %s839
        %v841 = vmul.f32 %v840, %v408
        %v842 = vmul.f32 %v840, %v409
        %v843 = vmul.f32 %v840, %v410
        %v847 = vrot.slane %v841, 2
        %v848 = vrot.slane %v842, 2
        %v849 = vsel %vm443, %v847, %v848
        %v850 = vrot.slane %v843, 2
        %v851 = vsel %vm443, %v848, %v850
        %852 = vrot.lane.b32.xlu0 %v849, 125
        %v853 = vpop.permute.xlu0 %852
        %854 = vrot.lane.b32.xlu0 %v851, 125
        %v855 = vpop.permute.xlu0 %854
        %v858 = vadd.f32 %v837, %v853
        %v859 = vadd.f32 %v838, %v855
        %s860 = sld [smem:[#allocation9 + $0x18]]
        %v861 = vstv %s860
        %v862 = vmul.f32 %v861, %v408
        %v863 = vmul.f32 %v861, %v409
        %v864 = vmul.f32 %v861, %v410
        %v868 = vrot.slane %v862, 3
        %v869 = vrot.slane %v863, 3
        %v870 = vsel %vm461, %v868, %v869
        %v871 = vrot.slane %v864, 3
        %v872 = vsel %vm461, %v869, %v871
        %873 = vrot.lane.b32.xlu0 %v870, 125
        %v874 = vpop.permute.xlu0 %873
        %875 = vrot.lane.b32.xlu0 %v872, 125
        %v876 = vpop.permute.xlu0 %875
        %v879 = vadd.f32 %v858, %v874
        %v880 = vadd.f32 %v859, %v876
        %s881 = sld [smem:[#allocation9 + $0x1f]]
        %v882 = vstv %s881
        %v883 = vmul.f32 %v882, %v408
        %v884 = vmul.f32 %v882, %v409
        %v885 = vmul.f32 %v882, %v410
        %v889 = vrot.slane %v883, 4
        %v890 = vrot.slane %v884, 4
        %v891 = vsel %vm204, %v889, %v890
        %v892 = vrot.slane %v885, 4
        %v893 = vsel %vm204, %v890, %v892
        %894 = vrot.lane.b32.xlu0 %v891, 125
        %v895 = vpop.permute.xlu0 %894
        %896 = vrot.lane.b32.xlu0 %v893, 125
        %v897 = vpop.permute.xlu0 %896
        %v900 = vadd.f32 %v879, %v895
        %v901 = vadd.f32 %v880, %v897
        %s902 = sld [smem:[#allocation9 + $0x26]]
        %v903 = vstv %s902
        %v904 = vmul.f32 %v903, %v408
        %v905 = vmul.f32 %v903, %v409
        %v906 = vmul.f32 %v903, %v410
        %v910 = vrot.slane %v904, 5
        %v911 = vrot.slane %v905, 5
        %v912 = vsel %vm496, %v910, %v911
        %v913 = vrot.slane %v906, 5
        %v914 = vsel %vm496, %v911, %v913
        %915 = vrot.lane.b32.xlu0 %v912, 125
        %v916 = vpop.permute.xlu0 %915
        %917 = vrot.lane.b32.xlu0 %v914, 125
        %v918 = vpop.permute.xlu0 %917
        %v921 = vadd.f32 %v900, %v916
        %v922 = vadd.f32 %v901, %v918
        %s923 = sld [smem:[#allocation9 + $0x2d]]
        %v924 = vstv %s923
        %v925 = vmul.f32 %v924, %v408
        %v926 = vmul.f32 %v924, %v409
        %v927 = vmul.f32 %v924, %v410
        %v931 = vrot.slane %v925, 6
        %v932 = vrot.slane %v926, 6
        %v933 = vsel %vm514, %v931, %v932
        %v934 = vrot.slane %v927, 6
        %v935 = vsel %vm514, %v932, %v934
        %936 = vrot.lane.b32.xlu0 %v933, 125
        %v937 = vpop.permute.xlu0 %936
        %938 = vrot.lane.b32.xlu0 %v935, 125
        %v939 = vpop.permute.xlu0 %938
        %v942 = vadd.f32 %v921, %v937
        %v943 = vadd.f32 %v922, %v939
        %s944 = sld [smem:[#allocation9 + $0x4]]
        %v945 = vstv %s944
        %v946 = vmul.f32 %v945, %v408
        %v947 = vmul.f32 %v945, %v409
        %950 = vrot.lane.b32.xlu0 %v946, 124
        %v951 = vpop.permute.xlu0 %950
        %952 = vrot.lane.b32.xlu0 %v947, 124
        %v953 = vpop.permute.xlu0 %952
        %v956 = vadd.f32 %v942, %v951
        %v957 = vadd.f32 %v943, %v953
        %s958 = sld [smem:[#allocation9 + $0xb]]
        %v959 = vstv %s958
        %v960 = vmul.f32 %v959, %v408
        %v961 = vmul.f32 %v959, %v409
        %v962 = vmul.f32 %v959, %v410
        %v966 = vrot.slane %v960, 1
        %v967 = vrot.slane %v961, 1
        %v968 = vsel %vm425, %v966, %v967
        %v969 = vrot.slane %v962, 1
        %v970 = vsel %vm425, %v967, %v969
        %971 = vrot.lane.b32.xlu0 %v968, 124
        %v972 = vpop.permute.xlu0 %971
        %973 = vrot.lane.b32.xlu0 %v970, 124
        %v974 = vpop.permute.xlu0 %973
        %v977 = vadd.f32 %v956, %v972
        %v978 = vadd.f32 %v957, %v974
        %s979 = sld [smem:[#allocation9 + $0x12]]
        %v980 = vstv %s979
        %v981 = vmul.f32 %v980, %v408
        %v982 = vmul.f32 %v980, %v409
        %v983 = vmul.f32 %v980, %v410
        %v987 = vrot.slane %v981, 2
        %v988 = vrot.slane %v982, 2
        %v989 = vsel %vm443, %v987, %v988
        %v990 = vrot.slane %v983, 2
        %v991 = vsel %vm443, %v988, %v990
        %992 = vrot.lane.b32.xlu0 %v989, 124
        %v993 = vpop.permute.xlu0 %992
        %994 = vrot.lane.b32.xlu0 %v991, 124
        %v995 = vpop.permute.xlu0 %994
        %v998 = vadd.f32 %v977, %v993
        %v999 = vadd.f32 %v978, %v995
        %s1000 = sld [smem:[#allocation9 + $0x19]]
        %v1001 = vstv %s1000
        %v1002 = vmul.f32 %v1001, %v408
        %v1003 = vmul.f32 %v1001, %v409
        %v1004 = vmul.f32 %v1001, %v410
        %v1008 = vrot.slane %v1002, 3
        %v1009 = vrot.slane %v1003, 3
        %v1010 = vsel %vm461, %v1008, %v1009
        %v1011 = vrot.slane %v1004, 3
        %v1012 = vsel %vm461, %v1009, %v1011
        %1013 = vrot.lane.b32.xlu0 %v1010, 124
        %v1014 = vpop.permute.xlu0 %1013
        %1015 = vrot.lane.b32.xlu0 %v1012, 124
        %v1016 = vpop.permute.xlu0 %1015
        %v1019 = vadd.f32 %v998, %v1014
        %v1020 = vadd.f32 %v999, %v1016
        %s1021 = sld [smem:[#allocation9 + $0x20]]
        %v1022 = vstv %s1021
        %v1023 = vmul.f32 %v1022, %v408
        %v1024 = vmul.f32 %v1022, %v409
        %v1025 = vmul.f32 %v1022, %v410
        %v1029 = vrot.slane %v1023, 4
        %v1030 = vrot.slane %v1024, 4
        %v1031 = vsel %vm204, %v1029, %v1030
        %v1032 = vrot.slane %v1025, 4
        %v1033 = vsel %vm204, %v1030, %v1032
        %1034 = vrot.lane.b32.xlu0 %v1031, 124
        %v1035 = vpop.permute.xlu0 %1034
        %1036 = vrot.lane.b32.xlu0 %v1033, 124
        %v1037 = vpop.permute.xlu0 %1036
        %v1040 = vadd.f32 %v1019, %v1035
        %v1041 = vadd.f32 %v1020, %v1037
        %s1042 = sld [smem:[#allocation9 + $0x27]]
        %v1043 = vstv %s1042
        %v1044 = vmul.f32 %v1043, %v408
        %v1045 = vmul.f32 %v1043, %v409
        %v1046 = vmul.f32 %v1043, %v410
        %v1050 = vrot.slane %v1044, 5
        %v1051 = vrot.slane %v1045, 5
        %v1052 = vsel %vm496, %v1050, %v1051
        %v1053 = vrot.slane %v1046, 5
        %v1054 = vsel %vm496, %v1051, %v1053
        %1055 = vrot.lane.b32.xlu0 %v1052, 124
        %v1056 = vpop.permute.xlu0 %1055
        %1057 = vrot.lane.b32.xlu0 %v1054, 124
        %v1058 = vpop.permute.xlu0 %1057
        %v1061 = vadd.f32 %v1040, %v1056
        %v1062 = vadd.f32 %v1041, %v1058
        %s1063 = sld [smem:[#allocation9 + $0x2e]]
        %v1064 = vstv %s1063
        %v1065 = vmul.f32 %v1064, %v408
        %v1066 = vmul.f32 %v1064, %v409
        %v1067 = vmul.f32 %v1064, %v410
        %v1071 = vrot.slane %v1065, 6
        %v1072 = vrot.slane %v1066, 6
        %v1073 = vsel %vm514, %v1071, %v1072
        %v1074 = vrot.slane %v1067, 6
        %v1075 = vsel %vm514, %v1072, %v1074
        %1076 = vrot.lane.b32.xlu0 %v1073, 124
        %v1077 = vpop.permute.xlu0 %1076
        %1078 = vrot.lane.b32.xlu0 %v1075, 124
        %v1079 = vpop.permute.xlu0 %1078
        %v1082 = vadd.f32 %v1061, %v1077
        %v1083 = vadd.f32 %v1062, %v1079
        %s1084 = sld [smem:[#allocation9 + $0x5]]
        %v1085 = vstv %s1084
        %v1086 = vmul.f32 %v1085, %v408
        %v1087 = vmul.f32 %v1085, %v409
        %1090 = vrot.lane.b32.xlu0 %v1086, 123
        %v1091 = vpop.permute.xlu0 %1090
        %1092 = vrot.lane.b32.xlu0 %v1087, 123
        %v1093 = vpop.permute.xlu0 %1092
        %v1096 = vadd.f32 %v1082, %v1091
        %v1097 = vadd.f32 %v1083, %v1093
        %s1098 = sld [smem:[#allocation9 + $0xc]]
        %v1099 = vstv %s1098
        %v1100 = vmul.f32 %v1099, %v408
        %v1101 = vmul.f32 %v1099, %v409
        %v1102 = vmul.f32 %v1099, %v410
        %v1106 = vrot.slane %v1100, 1
        %v1107 = vrot.slane %v1101, 1
        %v1108 = vsel %vm425, %v1106, %v1107
        %v1109 = vrot.slane %v1102, 1
        %v1110 = vsel %vm425, %v1107, %v1109
        %1111 = vrot.lane.b32.xlu0 %v1108, 123
        %v1112 = vpop.permute.xlu0 %1111
        %1113 = vrot.lane.b32.xlu0 %v1110, 123
        %v1114 = vpop.permute.xlu0 %1113
        %v1117 = vadd.f32 %v1096, %v1112
        %v1118 = vadd.f32 %v1097, %v1114
        %s1119 = sld [smem:[#allocation9 + $0x13]]
        %v1120 = vstv %s1119
        %v1121 = vmul.f32 %v1120, %v408
        %v1122 = vmul.f32 %v1120, %v409
        %v1123 = vmul.f32 %v1120, %v410
        %v1127 = vrot.slane %v1121, 2
        %v1128 = vrot.slane %v1122, 2
        %v1129 = vsel %vm443, %v1127, %v1128
        %v1130 = vrot.slane %v1123, 2
        %v1131 = vsel %vm443, %v1128, %v1130
        %1132 = vrot.lane.b32.xlu0 %v1129, 123
        %v1133 = vpop.permute.xlu0 %1132
        %1134 = vrot.lane.b32.xlu0 %v1131, 123
        %v1135 = vpop.permute.xlu0 %1134
        %v1138 = vadd.f32 %v1117, %v1133
        %v1139 = vadd.f32 %v1118, %v1135
        %s1140 = sld [smem:[#allocation9 + $0x1a]]
        %v1141 = vstv %s1140
        %v1142 = vmul.f32 %v1141, %v408
        %v1143 = vmul.f32 %v1141, %v409
        %v1144 = vmul.f32 %v1141, %v410
        %v1148 = vrot.slane %v1142, 3
        %v1149 = vrot.slane %v1143, 3
        %v1150 = vsel %vm461, %v1148, %v1149
        %v1151 = vrot.slane %v1144, 3
        %v1152 = vsel %vm461, %v1149, %v1151
        %1153 = vrot.lane.b32.xlu0 %v1150, 123
        %v1154 = vpop.permute.xlu0 %1153
        %1155 = vrot.lane.b32.xlu0 %v1152, 123
        %v1156 = vpop.permute.xlu0 %1155
        %v1159 = vadd.f32 %v1138, %v1154
        %v1160 = vadd.f32 %v1139, %v1156
        %s1161 = sld [smem:[#allocation9 + $0x21]]
        %v1162 = vstv %s1161
        %v1163 = vmul.f32 %v1162, %v408
        %v1164 = vmul.f32 %v1162, %v409
        %v1165 = vmul.f32 %v1162, %v410
        %v1169 = vrot.slane %v1163, 4
        %v1170 = vrot.slane %v1164, 4
        %v1171 = vsel %vm204, %v1169, %v1170
        %v1172 = vrot.slane %v1165, 4
        %v1173 = vsel %vm204, %v1170, %v1172
        %1174 = vrot.lane.b32.xlu0 %v1171, 123
        %v1175 = vpop.permute.xlu0 %1174
        %1176 = vrot.lane.b32.xlu0 %v1173, 123
        %v1177 = vpop.permute.xlu0 %1176
        %v1180 = vadd.f32 %v1159, %v1175
        %v1181 = vadd.f32 %v1160, %v1177
        %s1182 = sld [smem:[#allocation9 + $0x28]]
        %v1183 = vstv %s1182
        %v1184 = vmul.f32 %v1183, %v408
        %v1185 = vmul.f32 %v1183, %v409
        %v1186 = vmul.f32 %v1183, %v410
        %v1190 = vrot.slane %v1184, 5
        %v1191 = vrot.slane %v1185, 5
        %v1192 = vsel %vm496, %v1190, %v1191
        %v1193 = vrot.slane %v1186, 5
        %v1194 = vsel %vm496, %v1191, %v1193
        %1195 = vrot.lane.b32.xlu0 %v1192, 123
        %v1196 = vpop.permute.xlu0 %1195
        %1197 = vrot.lane.b32.xlu0 %v1194, 123
        %v1198 = vpop.permute.xlu0 %1197
        %v1201 = vadd.f32 %v1180, %v1196
        %v1202 = vadd.f32 %v1181, %v1198
        %s1203 = sld [smem:[#allocation9 + $0x2f]]
        %v1204 = vstv %s1203
        %v1205 = vmul.f32 %v1204, %v408
        %v1206 = vmul.f32 %v1204, %v409
        %v1207 = vmul.f32 %v1204, %v410
        %v1211 = vrot.slane %v1205, 6
        %v1212 = vrot.slane %v1206, 6
        %v1213 = vsel %vm514, %v1211, %v1212
        %v1214 = vrot.slane %v1207, 6
        %v1215 = vsel %vm514, %v1212, %v1214
        %1216 = vrot.lane.b32.xlu0 %v1213, 123
        %v1217 = vpop.permute.xlu0 %1216
        %1218 = vrot.lane.b32.xlu0 %v1215, 123
        %v1219 = vpop.permute.xlu0 %1218
        %v1222 = vadd.f32 %v1201, %v1217
        %v1223 = vadd.f32 %v1202, %v1219
        %s1224 = sld [smem:[#allocation9 + $0x6]]
        %v1225 = vstv %s1224
        %v1226 = vmul.f32 %v1225, %v408
        %v1227 = vmul.f32 %v1225, %v409
        %1230 = vrot.lane.b32.xlu0 %v1226, 122
        %v1231 = vpop.permute.xlu0 %1230
        %1232 = vrot.lane.b32.xlu0 %v1227, 122
        %v1233 = vpop.permute.xlu0 %1232
        %v1236 = vadd.f32 %v1222, %v1231
        %v1237 = vadd.f32 %v1223, %v1233
        %s1238 = sld [smem:[#allocation9 + $0xd]]
        %v1239 = vstv %s1238
        %v1240 = vmul.f32 %v1239, %v408
        %v1241 = vmul.f32 %v1239, %v409
        %v1242 = vmul.f32 %v1239, %v410
        %v1246 = vrot.slane %v1240, 1
        %v1247 = vrot.slane %v1241, 1
        %v1248 = vsel %vm425, %v1246, %v1247
        %v1249 = vrot.slane %v1242, 1
        %v1250 = vsel %vm425, %v1247, %v1249
        %1251 = vrot.lane.b32.xlu0 %v1248, 122
        %v1252 = vpop.permute.xlu0 %1251
        %1253 = vrot.lane.b32.xlu0 %v1250, 122
        %v1254 = vpop.permute.xlu0 %1253
        %v1257 = vadd.f32 %v1236, %v1252
        %v1258 = vadd.f32 %v1237, %v1254
        %s1259 = sld [smem:[#allocation9 + $0x14]]
        %v1260 = vstv %s1259
        %v1261 = vmul.f32 %v1260, %v408
        %v1262 = vmul.f32 %v1260, %v409
        %v1263 = vmul.f32 %v1260, %v410
        %v1267 = vrot.slane %v1261, 2
        %v1268 = vrot.slane %v1262, 2
        %v1269 = vsel %vm443, %v1267, %v1268
        %v1270 = vrot.slane %v1263, 2
        %v1271 = vsel %vm443, %v1268, %v1270
        %1272 = vrot.lane.b32.xlu0 %v1269, 122
        %v1273 = vpop.permute.xlu0 %1272
        %1274 = vrot.lane.b32.xlu0 %v1271, 122
        %v1275 = vpop.permute.xlu0 %1274
        %v1278 = vadd.f32 %v1257, %v1273
        %v1279 = vadd.f32 %v1258, %v1275
        %s1280 = sld [smem:[#allocation9 + $0x1b]]
        %v1281 = vstv %s1280
        %v1282 = vmul.f32 %v1281, %v408
        %v1283 = vmul.f32 %v1281, %v409
        %v1284 = vmul.f32 %v1281, %v410
        %v1288 = vrot.slane %v1282, 3
        %v1289 = vrot.slane %v1283, 3
        %v1290 = vsel %vm461, %v1288, %v1289
        %v1291 = vrot.slane %v1284, 3
        %v1292 = vsel %vm461, %v1289, %v1291
        %1293 = vrot.lane.b32.xlu0 %v1290, 122
        %v1294 = vpop.permute.xlu0 %1293
        %1295 = vrot.lane.b32.xlu0 %v1292, 122
        %v1296 = vpop.permute.xlu0 %1295
        %v1299 = vadd.f32 %v1278, %v1294
        %v1300 = vadd.f32 %v1279, %v1296
        %s1301 = sld [smem:[#allocation9 + $0x22]]
        %v1302 = vstv %s1301
        %v1303 = vmul.f32 %v1302, %v408
        %v1304 = vmul.f32 %v1302, %v409
        %v1305 = vmul.f32 %v1302, %v410
        %v1309 = vrot.slane %v1303, 4
        %v1310 = vrot.slane %v1304, 4
        %v1311 = vsel %vm204, %v1309, %v1310
        %v1312 = vrot.slane %v1305, 4
        %v1313 = vsel %vm204, %v1310, %v1312
        %1314 = vrot.lane.b32.xlu0 %v1311, 122
        %v1315 = vpop.permute.xlu0 %1314
        %1316 = vrot.lane.b32.xlu0 %v1313, 122
        %v1317 = vpop.permute.xlu0 %1316
        %v1320 = vadd.f32 %v1299, %v1315
        %v1321 = vadd.f32 %v1300, %v1317
        %s1322 = sld [smem:[#allocation9 + $0x29]]
        %v1323 = vstv %s1322
        %v1324 = vmul.f32 %v1323, %v408
        %v1325 = vmul.f32 %v1323, %v409
        %v1326 = vmul.f32 %v1323, %v410
        %v1330 = vrot.slane %v1324, 5
        %v1331 = vrot.slane %v1325, 5
        %v1332 = vsel %vm496, %v1330, %v1331
        %v1333 = vrot.slane %v1326, 5
        %v1334 = vsel %vm496, %v1331, %v1333
        %1335 = vrot.lane.b32.xlu0 %v1332, 122
        %v1336 = vpop.permute.xlu0 %1335
        %1337 = vrot.lane.b32.xlu0 %v1334, 122
        %v1338 = vpop.permute.xlu0 %1337
        %v1341 = vadd.f32 %v1320, %v1336
        %v1342 = vadd.f32 %v1321, %v1338
        %s1343 = sld [smem:[#allocation9 + $0x30]]
        %v1344 = vstv %s1343
        %v1345 = vmul.f32 %v1344, %v408
        %v1346 = vmul.f32 %v1344, %v409
        %v1347 = vmul.f32 %v1344, %v410
        %v1351 = vrot.slane %v1345, 6
        %v1352 = vrot.slane %v1346, 6
        %v1353 = vsel %vm514, %v1351, %v1352
        %v1354 = vrot.slane %v1347, 6
        %v1355 = vsel %vm514, %v1352, %v1354
        %1356 = vrot.lane.b32.xlu0 %v1353, 122
        %v1357 = vpop.permute.xlu0 %1356
        %1358 = vrot.lane.b32.xlu0 %v1355, 122
        %v1359 = vpop.permute.xlu0 %1358
        %v1362 = vadd.f32 %v1341, %v1357
        %v1363 = vadd.f32 %v1342, %v1359
        %s1364 = sld [smem:[#allocation4]]
        %v1365 = vstv %s1364
        %v1366 = vadd.f32 %v1362, %v1365
        %v1367 = vadd.f32 %v1363, %v1365
        %v1368 = vxor.u32 %v1366, 2147483648
        %v1369 = vxor.u32 %v1367, 2147483648
        %v1370 = vmul.f32 %v1368, 1.442695
        %v1371 = vpow.pop %v1370
        %v1372 = vmul.f32 %v1369, 1.442695
        %v1373 = vpow.pop %v1372
        %v1374 = vadd.f32 %v1371, 1.0
        %v1375 = vadd.f32 %v1373, 1.0
        %v1376 = vrcp.pop %v1374
        %v1377 = vmul.f32 1.0, %v1376
        %v1378 = vrcp.pop %v1375
        %v1379 = vmul.f32 1.0, %v1378
        %vm1380 = vcmp.lt.s32.totalorder %v237, 16
        %vm1381 = vmand %vm238, %vm1380
        %1382 = vst.msk [vmem:[#allocation3] sm:$0x1] %vm1381, %v1377
        %v1385 = vunpack.c.l.s4 1966171168
        %v1386 = vunpack.c.0.s8 %v1385
        %v1387 = vlaneseq
        %v1388 = vshrl.u32 %v1387, 7
        %v1389 = vsub.s32 %v1386, %v1388
        %v1390 = vrot.slane %v1377, %v1389
        %v1391 = vcombine.high %v1390, %v1390
        %v1393 = vunpack.c.l.s4 1966171168
        %v1394 = vunpack.c.0.s8 %v1393
        %v1395 = vlaneseq
        %v1396 = vshrl.u32 %v1395, 7
        %v1397 = vsub.s32 %v1394, %v1396
        %v1398 = vrot.slane %v1390, %v1397
        %v1400 = vunpack.c.l.s4 1966171168
        %v1401 = vunpack.c.0.s8 %v1400
        %v1402 = vlaneseq
        %v1403 = vshrl.u32 %v1402, 7
        %v1404 = vsub.s32 %v1401, %v1403
        %v1405 = vrot.slane %v1391, %v1404
        %1406 = vrot.lane.b32.xlu0 %v1405, 16
        %v1407 = vpop.permute.xlu0 %1406
        %vm1409 = vcmp.ge.s32.totalorder %v237, 16
        %vm1410 = vcmp.lt.s32.totalorder %v237, 32
        %vm1411 = vmand %vm1409, %vm1410
        %1412 = vst.msk [vmem:[#allocation3] sm:$0x1] %vm1411, %v1407
        %v1413 = vcombine.high %v1398, %v1398
        %1414 = vrot.lane.b32.xlu0 %v1413, 32
        %v1415 = vpop.permute.xlu0 %1414
        %vm1417 = vcmp.ge.s32.totalorder %v237, 32
        %vm1418 = vcmp.lt.s32.totalorder %v237, 48
        %vm1419 = vmand %vm1417, %vm1418
        %1420 = vst.msk [vmem:[#allocation3] sm:$0x1] %vm1419, %v1415
        %v1421 = vcombine.high %v1405, %v1405
        %1422 = vrot.lane.b32.xlu0 %v1421, 48
        %v1423 = vpop.permute.xlu0 %1422
        %vm1425 = vcmp.ge.s32.totalorder %v237, 48
        %vm1426 = vcmp.lt.s32.totalorder %v237, 64
        %vm1427 = vmand %vm1425, %vm1426
        %1428 = vst.msk [vmem:[#allocation3] sm:$0x1] %vm1427, %v1423
        %v1429 = vcombine.high %v1377, %v1377
        %v1431 = vunpack.c.l.s4 1966171168
        %v1432 = vunpack.c.0.s8 %v1431
        %v1433 = vlaneseq
        %v1434 = vshrl.u32 %v1433, 7
        %v1435 = vsub.s32 %v1432, %v1434
        %v1436 = vrot.slane %v1429, %v1435
        %v1438 = vunpack.c.l.s4 1966171168
        %v1439 = vunpack.c.0.s8 %v1438
        %v1440 = vlaneseq
        %v1441 = vshrl.u32 %v1440, 7
        %v1442 = vsub.s32 %v1439, %v1441
        %v1443 = vrot.slane %v1436, %v1442
        %1444 = vrot.lane.b32.xlu0 %v1443, 64
        %v1445 = vpop.permute.xlu0 %1444
        %vm1447 = vcmp.ge.s32.totalorder %v237, 64
        %vm1448 = vcmp.lt.s32.totalorder %v237, 80
        %vm1449 = vmand %vm1447, %vm1448
        %1450 = vst.msk [vmem:[#allocation3] sm:$0x1] %vm1449, %v1445
        %v1451 = vcombine.high %v1436, %v1436
        %v1453 = vunpack.c.l.s4 1966171168
        %v1454 = vunpack.c.0.s8 %v1453
        %v1455 = vlaneseq
        %v1456 = vshrl.u32 %v1455, 7
        %v1457 = vsub.s32 %v1454, %v1456
        %v1458 = vrot.slane %v1451, %v1457
        %1459 = vrot.lane.b32.xlu0 %v1458, 80
        %v1460 = vpop.permute.xlu0 %1459
        %vm1462 = vcmp.ge.s32.totalorder %v237, 80
        %vm1463 = vcmp.lt.s32.totalorder %v237, 96
        %vm1464 = vmand %vm1462, %vm1463
        %1465 = vst.msk [vmem:[#allocation3] sm:$0x1] %vm1464, %v1460
        %v1466 = vcombine.high %v1443, %v1443
        %1467 = vrot.lane.b32.xlu0 %v1466, 96
        %v1468 = vpop.permute.xlu0 %1467
        %vm1470 = vcmp.ge.s32.totalorder %v237, 96
        %vm1471 = vcmp.lt.s32.totalorder %v237, 112
        %vm1472 = vmand %vm1470, %vm1471
        %1473 = vst.msk [vmem:[#allocation3] sm:$0x1] %vm1472, %v1468
        %v1474 = vcombine.high %v1458, %v1458
        %1475 = vrot.lane.b32.xlu0 %v1474, 112
        %v1476 = vpop.permute.xlu0 %1475
        %vm1478 = vcmp.ge.s32.totalorder %v237, 112
        %vm1479 = vcmp.lt.s32.totalorder %v237, 128
        %vm1480 = vmand %vm1478, %vm1479
        %1481 = vst.msk [vmem:[#allocation3] sm:$0x1] %vm1480, %v1476
        %1482 = vst.msk [vmem:[#allocation3 + $0x1] sm:$0x1] %vm1381, %v1379
        %v1485 = vunpack.c.l.s4 1966171168
        %v1486 = vunpack.c.0.s8 %v1485
        %v1487 = vlaneseq
        %v1488 = vshrl.u32 %v1487, 7
        %v1489 = vsub.s32 %v1486, %v1488
        %v1490 = vrot.slane %v1379, %v1489
        %v1491 = vcombine.high %v1490, %v1490
        %v1493 = vunpack.c.l.s4 1966171168
        %v1494 = vunpack.c.0.s8 %v1493
        %v1495 = vlaneseq
        %v1496 = vshrl.u32 %v1495, 7
        %v1497 = vsub.s32 %v1494, %v1496
        %v1498 = vrot.slane %v1490, %v1497
        %v1500 = vunpack.c.l.s4 1966171168
        %v1501 = vunpack.c.0.s8 %v1500
        %v1502 = vlaneseq
        %v1503 = vshrl.u32 %v1502, 7
        %v1504 = vsub.s32 %v1501, %v1503
        %v1505 = vrot.slane %v1491, %v1504
        %1506 = vrot.lane.b32.xlu0 %v1505, 16
        %v1507 = vpop.permute.xlu0 %1506
        %1509 = vst.msk [vmem:[#allocation3 + $0x1] sm:$0x1] %vm1411, %v1507
        %v1510 = vcombine.high %v1498, %v1498
        %1511 = vrot.lane.b32.xlu0 %v1510, 32
        %v1512 = vpop.permute.xlu0 %1511
        %1514 = vst.msk [vmem:[#allocation3 + $0x1] sm:$0x1] %vm1419, %v1512
        %v1515 = vcombine.high %v1505, %v1505
        %1516 = vrot.lane.b32.xlu0 %v1515, 48
        %v1517 = vpop.permute.xlu0 %1516
        %1519 = vst.msk [vmem:[#allocation3 + $0x1] sm:$0x1] %vm1427, %v1517
        %v1520 = vcombine.high %v1379, %v1379
        %v1522 = vunpack.c.l.s4 1966171168
        %v1523 = vunpack.c.0.s8 %v1522
        %v1524 = vlaneseq
        %v1525 = vshrl.u32 %v1524, 7
        %v1526 = vsub.s32 %v1523, %v1525
        %v1527 = vrot.slane %v1520, %v1526
        %v1529 = vunpack.c.l.s4 1966171168
        %v1530 = vunpack.c.0.s8 %v1529
        %v1531 = vlaneseq
        %v1532 = vshrl.u32 %v1531, 7
        %v1533 = vsub.s32 %v1530, %v1532
        %v1534 = vrot.slane %v1527, %v1533
        %1535 = vrot.lane.b32.xlu0 %v1534, 64
        %v1536 = vpop.permute.xlu0 %1535
        %1538 = vst.msk [vmem:[#allocation3 + $0x1] sm:$0x1] %vm1449, %v1536
        %v1539 = vcombine.high %v1527, %v1527
        %v1541 = vunpack.c.l.s4 1966171168
        %v1542 = vunpack.c.0.s8 %v1541
        %v1543 = vlaneseq
        %v1544 = vshrl.u32 %v1543, 7
        %v1545 = vsub.s32 %v1542, %v1544
        %v1546 = vrot.slane %v1539, %v1545
        %1547 = vrot.lane.b32.xlu0 %v1546, 80
        %v1548 = vpop.permute.xlu0 %1547
        %1550 = vst.msk [vmem:[#allocation3 + $0x1] sm:$0x1] %vm1464, %v1548
        %v1551 = vcombine.high %v1534, %v1534
        %1552 = vrot.lane.b32.xlu0 %v1551, 96
        %v1553 = vpop.permute.xlu0 %1552
        %1555 = vst.msk [vmem:[#allocation3 + $0x1] sm:$0x1] %vm1472, %v1553
        %v1556 = vcombine.high %v1546, %v1546
        %1557 = vrot.lane.b32.xlu0 %v1556, 112
        %v1558 = vpop.permute.xlu0 %1557
        %1560 = vst.msk [vmem:[#allocation3 + $0x1] sm:$0x1] %vm1480, %v1558
        %v1561 = vld [vmem:[%s172] sm:$0xff]
        %v1562 = vld [vmem:[#allocation3] sm:$0x3]
        %v1564 = vlaneseq
        %v1565 = vshrl.u32 %v1564, 7
        %v1566 = vsub.s32 0, %v1565
        %v1567 = vrot.slane %v1562, %v1566
        %v1568 = vlaneseq
        %v1569 = vshrl.u32 %v1568, 7
        %v1570 = vsub.s32 1, %v1569
        %v1571 = vrot.slane %v1562, %v1570
        %v1572 = vcombine.low %v1567, %v1571
        %v1574 = vmul.f32 %v1561, %v1572
        %1575 = vst [vmem:[%s199] sm:$0xff] %v1574
        %s1576 = sand.u32 %s98, 1
        %s1577 = scalar_lea.sflag [#allocation7], %s1576
        %s1578 = sand.u32 %s98, 1
        %s1579 = smul.addr %s1578, 8
        %s1580 = scalar_lea.vmem [#allocation10], %s1579
        // Predicated region
        $region41: #{tpu_custom_call.1} parent=31 // pred_check
          %p1581 = pneg %p108
        $region42: #{tpu_custom_call.1} parent=31 // pred_check_branch
          %1583 = sbr.rel (%p1581) target = $region44
        $region43: #{tpu_custom_call.1} parent=31 // pred_region
          %s1585 = ssub.s32 128, 128
          %1586 = vsyncadd %s1577, %s1585
          %s1587 = smul.addr %s22, 2
          %s1588 = smul.addr %s1587, 64
          %s1589 = scalar_lea.hbm %s3, %s1588
          %s1591 = sshll.u32 %s1580, 4
          %s1592 = int_to_ptr.vmem [resolvable:$true] %s1591
          %1594 = dma.vmem_to_hbm [thread:$0]  %s1592, 128, %s1589, %s1577
        $region44: #{tpu_custom_call.1} parent=31 // pred_fallthru
          _
      $region32: #{tpu_custom_call.1} parent=5 // pred_fallthru
        _
      %p1595 = scmp.le.s32.totalorder 2, %s17
      // Predicated region
      $region45: #{tpu_custom_call.1} parent=5 // pred_check
        %p1596 = pneg %p1595
      $region46: #{tpu_custom_call.1} parent=5 // pred_check_branch
        %1598 = sbr.rel (%p1596) target = $region48
      $region47: #{tpu_custom_call.1} parent=5 // pred_region
        %s1599 = ssub.s32 %s17, 2
        // Predicated region
        $region49: #{tpu_custom_call.1} parent=47 // pred_check
          %p1600 = pneg %p114
        $region50: #{tpu_custom_call.1} parent=47 // pred_check_branch
          %1602 = sbr.rel (%p1600) target = $region52
        $region51: #{tpu_custom_call.1} parent=47 // pred_region
          %s1603 = sand.u32 %s99, 1
          %s1604 = scalar_lea.sflag [#allocation7], %s1603
          %s1605 = sand.u32 %s99, 1
          %s1606 = smul.addr %s1605, 8
          %s1607 = scalar_lea.vmem [#allocation10], %s1606
          %1608 = dma.done %s1604, 128
        $region52: #{tpu_custom_call.1} parent=47 // pred_fallthru
          _
      $region48: #{tpu_custom_call.1} parent=5 // pred_fallthru
        _
    $region6: #{tpu_custom_call.1} parent=1 // loop_footer
      %s21 = sadd.s32 1, %s17
    $region7: #{tpu_custom_call.1} parent=1 // loop_footer_branch
      %16 = sbr.rel target = $region3
    $region8: #{tpu_custom_call.1} parent=1 // loop_exit
      _
    %1609 = vsyncpa [#allocation6], 1
    %s1610 = scalar_lea.sflag [#allocation6], 1
    %1611 = vsyncpa %s1610, 1
    %1612 = vsyncpa [#allocation7], 1
    %s1613 = scalar_lea.sflag [#allocation7], 1
    %1614 = vsyncpa %s1613, 1
    %1615 = vsyncpa [#allocation8], 1
    %s1616 = scalar_lea.sflag [#allocation8], 1
    %1617 = vsyncpa %s1616, 1

</llo_original>
